<compile_context>
chip_gen: v7x
topology: tpu7x:2x2x1
jax: 0.10.0
libtpu: 0.0.40
codegen_flags: <defaults>
</compile_context>

<pallas_src>
import functools
import math

import jax
import jax.numpy as jnp
import numpy as np
from jax.experimental import pallas as pl
from jax.experimental.pallas import tpu as pltpu

BN_EPS = 1e-5


def _reta_kernel(x_ref, cm_ref, g_ref, bias_ref, gamma_ref, beta_ref, wfc_ref,
                 bfc_ref, out_ref, rsum_ref, rsq_ref, *, B, W, Bt, has_pad):
    """Two-pass RETA forward.  Grid = (pass, batch_tile).

    x_ref:    (3E, Bt)    VMEM  im2col'd input tile (batch on the lane axis)
    cm_ref:   (FWp, 3E)   VMEM  constant im2col conv-weight matrix
    g_ref:    (FWp, FWp)  VMEM  0/1 "same filter" group matrix
    bias_ref/gamma_ref/beta_ref/wfc_ref: (FWp, 1) per-row conv bias / BN affine / FC weight
    bfc_ref:  (1, 1)      VMEM  FC bias
    out_ref:  (1, Bt)     VMEM  scores, lane-dense
    rsum_ref/rsq_ref: (FWp, 128) VMEM scratch — global BN sum / sum-of-squares per row
    """
    p = pl.program_id(0)   # 0: accumulate BN stats, 1: normalize + ReLU + FC
    b = pl.program_id(1)   # batch tile

    @pl.when((p == 0) & (b == 0))
    def _init():
        rsum_ref[...] = jnp.zeros_like(rsum_ref)
        rsq_ref[...] = jnp.zeros_like(rsq_ref)

    # conv2d(1, F, (3,3), valid) for every (filter, offset) at once, on the MXU.
    conv = jnp.dot(cm_ref[...], x_ref[...],
                   preferred_element_type=jnp.float32)          # (FWp, Bt)
    conv = conv + bias_ref[...]                                  # lane-broadcast (FWp,1)

    @pl.when(p == 0)
    def _stats():
        if has_pad:
            col = jax.lax.broadcasted_iota(jnp.int32, conv.shape, 1)
            m = jnp.where(col < (B - b * Bt), conv, 0.0)         # mask padded batch lanes
        else:
            m = conv
        mq = m * m
        # Fold the Bt lanes into the persistent 128-lane accumulators with 128-aligned
        # static lane slices (pure vreg selection, no relayout).
        ps = m[:, 0:128]
        pq = mq[:, 0:128]
        for c in range(1, Bt // 128):
            ps = ps + m[:, c * 128:(c + 1) * 128]
            pq = pq + mq[:, c * 128:(c + 1) * 128]
        rsum_ref[...] += ps
        rsq_ref[...] += pq

    @pl.when(p == 1)
    def _finalize():
        inv_n = 1.0 / float(B * W)   # true batch * true width (padded rows/lanes are exact 0)
        # Spread per-filter totals back to every row of that filter via the 0/1 group
        # matrix (square MXU matmul), then reduce the 128 lane buckets.
        gsum = jnp.sum(jnp.dot(g_ref[...], rsum_ref[...],
                               preferred_element_type=jnp.float32),
                       axis=1, keepdims=True)                    # (FWp, 1)
        gsq = jnp.sum(jnp.dot(g_ref[...], rsq_ref[...],
                              preferred_element_type=jnp.float32),
                      axis=1, keepdims=True)
        mean = gsum * inv_n
        # E[x^2]-E[x]^2 (clamped); fine in f32 at these magnitudes.
        # TODO(synk): switch to a Welford-style accumulation if conv outputs ever have a
        # large mean relative to their spread.
        var = jnp.maximum(gsq * inv_n - mean * mean, 0.0)
        rstd = jax.lax.rsqrt(var + BN_EPS)
        scale = gamma_ref[...] * rstd                            # (FWp, 1)
        shift = beta_ref[...] - mean * scale
        h = jnp.maximum(conv * scale + shift, 0.0)               # (FWp, Bt)
        score = jnp.sum(h * wfc_ref[...], axis=0, keepdims=True)  # (1, Bt)
        out_ref[...] = score + bfc_ref[...]


def reta_pallas(x_flat, consts, *, B, block_b):
    """x_flat: (3E, B_pad) f32, batch on the lane axis.  Returns scores (B, 1)."""
    cm, G, bias_row, gamma_row, beta_row, wfc_row, bfc11 = consts
    threeE, B_pad = x_flat.shape
    FWp = cm.shape[0]
    E = threeE // 3
    W = E - 2
    assert block_b % 128 == 0 and B_pad % block_b == 0
    n_b = B_pad // block_b

    kernel = functools.partial(_reta_kernel, B=B, W=W, Bt=block_b,
                               has_pad=(B_pad != B))

    def const2d(shape):
        return pl.BlockSpec(shape, lambda p, b: (0, 0))

    out = pl.pallas_call(
        kernel,
        out_shape=jax.ShapeDtypeStruct((1, B_pad), jnp.float32),
        grid=(2, n_b),                       # (pass, batch tile)
        in_specs=[
            pl.BlockSpec((threeE, block_b), lambda p, b: (0, b)),   # x tile
            const2d((FWp, threeE)),                                  # conv_mat
            const2d((FWp, FWp)),                                     # group matrix
            const2d((FWp, 1)),                                       # conv bias / row
            const2d((FWp, 1)),                                       # gamma / row
            const2d((FWp, 1)),                                       # beta / row
            const2d((FWp, 1)),                                       # FC weight / row
            const2d((1, 1)),                                         # FC bias
        ],
        # Pass 0 never writes scores; map all its steps to block 0 so no uninitialized
        # output block is ever flushed to HBM (it is only written back after pass 1
        # has filled it with real data).
        out_specs=pl.BlockSpec((1, block_b), lambda p, b: (0, b * p)),
        scratch_shapes=[pltpu.VMEM((FWp, 128), jnp.float32),
                        pltpu.VMEM((FWp, 128), jnp.float32)],
        compiler_params=pltpu.CompilerParams(
            # BN statistics are a global reduction over the whole batch, so both grid
            # axes run sequentially on one core (see the v7x two-call TODO above).
            dimension_semantics=("arbitrary", "arbitrary"),
            vmem_limit_bytes=48 * 1024 * 1024),
    )(x_flat, cm, G, bias_row, gamma_row, beta_row, wfc_row, bfc11)
    return out[0, :B][:, None]


def build_consts(wconv, bconv, gamma, beta, wfc, bfc, F, E):
    """Precompute the constant kernel operands from torch-layout parameters."""
    W = E - 2
    Wp = ((W + 7) // 8) * 8            # per-filter row group padded to a sublane multiple
    FWp = F * Wp
    wc = np.asarray(wconv, np.float32).reshape(F, 3, 3)
    wfc2 = np.asarray(wfc, np.float32).reshape(F, W)        # torch Linear(1, F*W), filter-major
    cm = np.zeros((FWp, 3 * E), np.float32)
    bias = np.zeros((FWp, 1), np.float32)
    gam = np.zeros((FWp, 1), np.float32)
    bet = np.zeros((FWp, 1), np.float32)
    wfr = np.zeros((FWp, 1), np.float32)
    G = np.zeros((FWp, FWp), np.float32)
    for f in range(F):
        for w in range(W):
            r = f * Wp + w
            for i in range(3):
                for j in range(3):
                    cm[r, i * E + w + j] = wc[f, i, j]
            bias[r, 0] = np.asarray(bconv)[f]
            gam[r, 0] = np.asarray(gamma)[f]
            bet[r, 0] = np.asarray(beta)[f]
            wfr[r, 0] = wfc2[f, w]
        G[f * Wp:(f + 1) * Wp, f * Wp:f * Wp + W] = 1.0       # spread per-filter sums to rows
    bfc11 = np.asarray(bfc, np.float32).reshape(1, 1)
    return (jnp.asarray(cm), jnp.asarray(G), jnp.asarray(bias), jnp.asarray(gam),
            jnp.asarray(bet), jnp.asarray(wfr), jnp.asarray(bfc11))


def forward(x_batch, params, consts, B, E, *, block_b):
    """Mirrors RETA_NO_TYPES.forward: embedding gathers + conv/BN/ReLU/FC kernel."""
    B_pad = ((B + block_b - 1) // block_b) * block_b
    rel0 = x_batch[:, 0]     # module: cols 0,2 -> relations (only slot 0 used)
    ent0 = x_batch[:, 1]     # module: cols 1,3 -> entities  (slots 0 and 1 used)
    ent1 = x_batch[:, 3]
    if B_pad != B:
        pad = jnp.zeros((B_pad - B,), x_batch.dtype)   # id 0 == padding_idx -> zero row
        rel0 = jnp.concatenate([rel0, pad])
        ent0 = jnp.concatenate([ent0, pad])
        ent1 = jnp.concatenate([ent1, pad])
    # Tables stored transposed (E, N): gathering along axis=1 yields the kernel's
    # (rows, batch-on-lanes) layout directly — no big transpose / jnp.pad of x.
    e0 = jnp.take(params["emb_ent_t"], ent0, axis=1)    # (E, B_pad)
    r0 = jnp.take(params["emb_rel_t"], rel0, axis=1)
    e1 = jnp.take(params["emb_ent_t"], ent1, axis=1)
    x_flat = jnp.concatenate([e0, r0, e1], axis=0)      # (3E, B_pad): [entity0; relation0; entity1]
    score = reta_pallas(x_flat, consts, B=B, block_b=block_b)
    return x_flat, score


def reta_reference(x3, wconv, bconv, gamma, beta, wfc, bfc):
    """Pure-JAX reference mirroring the PyTorch ops (x3: (3, E, B))."""
    _, E, B = x3.shape
    W = E - 2
    F = bconv.shape[0]
    xb = jnp.transpose(x3, (2, 0, 1))                    # (B, 3, E)
    w = wconv.reshape(F, 3, 3)
    acc = jnp.zeros((B, F, W), jnp.float32) + bconv[None, :, None]
    for i in range(3):
        for j in range(3):
            acc = acc + xb[:, i, j:j + W][:, None, :] * w[None, :, i, j, None]
    mean = jnp.mean(acc, axis=(0, 2), keepdims=True)
    var = jnp.mean((acc - mean) ** 2, axis=(0, 2), keepdims=True)
    h = (acc - mean) / jnp.sqrt(var + BN_EPS)
    h = h * gamma[None, :, None] + beta[None, :, None]
    h = jnp.maximum(h, 0.0)
    score = jnp.einsum("bfw,fw->b", h, wfc.reshape(F, W)) + bfc[0]
    return score[:, None]


if __name__ == "__main__":
    # Small shapes consistent with the module.
    num_relations, num_entities, num_types = 10, 20, 5
    E = 32            # embedding_size
    F = 4             # num_filters
    B = 2             # batch
    W = E - 2

    key = jax.random.PRNGKey(0)
    k_rel, k_ent, k_conv, k_fc, k_ids, k_bn = jax.random.split(key, 6)

    bound = math.sqrt(1.0 / E)
    emb_rel = jax.random.uniform(k_rel, (num_relations, E), jnp.float32,
                                 -bound, bound).at[0].set(0.0)   # padding_idx=0
    emb_ent = jax.random.uniform(k_ent, (num_entities, E), jnp.float32,
                                 -bound, bound).at[0].set(0.0)   # padding_idx=0

    # conv1: truncated_normal_(std=0.1) approximated by normal*0.1.
    # TODO(synk): exact truncated-normal resampling not reproduced (synthetic init).
    wconv = 0.1 * jax.random.normal(k_conv, (F, 1, 3, 3), jnp.float32)
    # Module init uses zero conv bias / gamma=1 / beta=0; small random values are used here
    # instead so the bias / affine code paths in the kernel are actually exercised.
    bconv = 0.05 * jax.random.normal(jax.random.fold_in(k_bn, 0), (F,), jnp.float32)
    gamma = 1.0 + 0.1 * jax.random.normal(jax.random.fold_in(k_bn, 1), (F,), jnp.float32)
    beta = 0.1 * jax.random.normal(jax.random.fold_in(k_bn, 2), (F,), jnp.float32)

    # f_FCN_net: Linear(F*(E-2), 1), xavier_normal_ weight, zero bias.
    std = math.sqrt(2.0 / (F * W + 1))
    wfc = std * jax.random.normal(k_fc, (1, F * W), jnp.float32)
    bfc = jnp.zeros((1,), jnp.float32)

    params = dict(emb_rel_t=emb_rel.T, emb_ent_t=emb_ent.T)
    consts = build_consts(wconv, bconv, gamma, beta, wfc, bfc, F, E)

    # x_batch columns: [rel0, ent0, rel1, ent1] (module: cols 0,2 relations; 1,3 entities).
    x_batch = jnp.stack([
        jax.random.randint(k_ids, (B,), 1, num_relations),
        jax.random.randint(jax.random.fold_in(k_ids, 1), (B,), 1, num_entities),
        jax.random.randint(jax.random.fold_in(k_ids, 2), (B,), 1, num_relations),
        jax.random.randint(jax.random.fold_in(k_ids, 3), (B,), 1, num_entities),
    ], axis=1)

    block_b = min(2048, ((B + 127) // 128) * 128)
    x_flat, out = forward(x_batch, params, consts, B, E, block_b=block_b)
    out = jax.block_until_ready(out)

    ref = reta_reference(x_flat[:, :B].reshape(3, E, B),
                         wconv, bconv, gamma, beta, wfc, bfc)
    assert out.shape == (B, 1)
    # Tolerance accounts for possible reduced-precision (bf16 pass) f32 matmuls on the MXU,
    # amplified by the BatchNorm 1/std; structural errors would be O(0.1-1).
    assert jnp.allclose(out, ref, atol=1e-2, rtol=1e-2), (out, ref)

    print("KERNEL_OK")
</pallas_src>

<mosaic_0001>
module attributes {stable_mosaic.version = 11 : i64} {
  func.func @_reta_kernel(%arg0: i32, %arg1: i32, %arg2: memref<96x128xf32, #tpu.memory_space<vmem>>, %arg3: memref<128x96xf32, #tpu.memory_space<vmem>>, %arg4: memref<128x128xf32, #tpu.memory_space<vmem>>, %arg5: memref<128x1xf32, #tpu.memory_space<vmem>>, %arg6: memref<128x1xf32, #tpu.memory_space<vmem>>, %arg7: memref<128x1xf32, #tpu.memory_space<vmem>>, %arg8: memref<128x1xf32, #tpu.memory_space<vmem>>, %arg9: memref<1x1xf32, #tpu.memory_space<vmem>>, %arg10: memref<1x128xf32, #tpu.memory_space<vmem>>, %arg11: memref<128x128xf32, #tpu.memory_space<vmem>>, %arg12: memref<128x128xf32, #tpu.memory_space<vmem>>) attributes {dimension_semantics = [#tpu.dimension_semantics<arbitrary>, #tpu.dimension_semantics<arbitrary>], iteration_bounds = array<i64: 2, 1>, scalar_prefetch = 0 : i64, scratch_operands = 2 : i64, tpu.core_type = #tpu.core_type<tc>, window_params = [{transform_indices = @transform_0, window_bounds = array<i64: 96, 128>}, {pipeline_mode = #tpu.pipeline_mode<synchronous>, transform_indices = @transform_1, window_bounds = array<i64: 128, 96>}, {pipeline_mode = #tpu.pipeline_mode<synchronous>, transform_indices = @transform_2, window_bounds = array<i64: 128, 128>}, {pipeline_mode = #tpu.pipeline_mode<synchronous>, transform_indices = @transform_3, window_bounds = array<i64: 128, 1>}, {pipeline_mode = #tpu.pipeline_mode<synchronous>, transform_indices = @transform_4, window_bounds = array<i64: 128, 1>}, {pipeline_mode = #tpu.pipeline_mode<synchronous>, transform_indices = @transform_5, window_bounds = array<i64: 128, 1>}, {pipeline_mode = #tpu.pipeline_mode<synchronous>, transform_indices = @transform_6, window_bounds = array<i64: 128, 1>}, {pipeline_mode = #tpu.pipeline_mode<synchronous>, transform_indices = @transform_7, window_bounds = array<i64: 1, 1>}, {transform_indices = @transform_8, window_bounds = array<i64: 1, 128>}]} {
    %c0_i32 = arith.constant 0 : i32
    %0 = arith.cmpi eq, %arg0, %c0_i32 : i32
    %c0_i32_0 = arith.constant 0 : i32
    %1 = arith.cmpi eq, %arg1, %c0_i32_0 : i32
    %2 = arith.andi %0, %1 : i1
    %3 = arith.extui %2 : i1 to i32
    %c0_i32_1 = arith.constant 0 : i32
    %4 = arith.cmpi ne, %3, %c0_i32_1 : i32
    scf.if %4 {
      %cst_10 = arith.constant 0.000000e+00 : f32
      %17 = vector.broadcast %cst_10 : f32 to vector<128x128xf32>
      %c0_11 = arith.constant 0 : index
      %c0_12 = arith.constant 0 : index
      %18 = vector.load %arg11[%c0_11, %c0_12] : memref<128x128xf32, #tpu.memory_space<vmem>>, vector<128x128xf32>
      tpu.vector_store %arg11[%c0_11, %c0_12], %17 {strides = array<i32>} : memref<128x128xf32, #tpu.memory_space<vmem>>, vector<128x128xf32>,
      %cst_13 = arith.constant 0.000000e+00 : f32
      %19 = vector.broadcast %cst_13 : f32 to vector<128x128xf32>
      %c0_14 = arith.constant 0 : index
      %c0_15 = arith.constant 0 : index
      %20 = vector.load %arg12[%c0_14, %c0_15] : memref<128x128xf32, #tpu.memory_space<vmem>>, vector<128x128xf32>
      tpu.vector_store %arg12[%c0_14, %c0_15], %19 {strides = array<i32>} : memref<128x128xf32, #tpu.memory_space<vmem>>, vector<128x128xf32>,
    } else {
    }
    %c0 = arith.constant 0 : index
    %c0_2 = arith.constant 0 : index
    %5 = vector.load %arg3[%c0, %c0_2] : memref<128x96xf32, #tpu.memory_space<vmem>>, vector<128x96xf32>
    %c0_3 = arith.constant 0 : index
    %c0_4 = arith.constant 0 : index
    %6 = vector.load %arg2[%c0_3, %c0_4] : memref<96x128xf32, #tpu.memory_space<vmem>>, vector<96x128xf32>
    %cst = arith.constant dense<0.000000e+00> : vector<128x128xf32>
    %7 = tpu.matmul %5, %6, %cst {dimension_numbers = #tpu.dot_dimension_numbers<[1], [0], [0], [1], [0, 0, 1, 1], [], []>} : vector<128x96xf32>, vector<96x128xf32>, vector<128x128xf32> -> vector<128x128xf32>
    %c0_5 = arith.constant 0 : index
    %c0_6 = arith.constant 0 : index
    %8 = vector.load %arg5[%c0_5, %c0_6] : memref<128x1xf32, #tpu.memory_space<vmem>>, vector<128x1xf32>
    %9 = vector.broadcast %8 : vector<128x1xf32> to vector<128x128xf32>
    %10 = arith.addf %7, %9 : vector<128x128xf32>
    %c0_i32_7 = arith.constant 0 : i32
    %11 = arith.cmpi eq, %arg0, %c0_i32_7 : i32
    %12 = arith.extui %11 : i1 to i32
    %c0_i32_8 = arith.constant 0 : i32
    %13 = arith.cmpi ne, %12, %c0_i32_8 : i32
    scf.if %13 {
      %17 = tpu.iota {dimensions = array<i32: 1>} : vector<128x128xi32>
      %c128_i32 = arith.constant 128 : i32
      %18 = arith.muli %arg1, %c128_i32 : i32
      %c2_i32 = arith.constant 2 : i32
      %19 = arith.subi %c2_i32, %18 : i32
      %20 = vector.broadcast %19 : i32 to vector<128x128xi32>
      %21 = arith.cmpi slt, %17, %20 : vector<128x128xi32>
      %cst_10 = arith.constant 0.000000e+00 : f32
      %22 = vector.broadcast %cst_10 : f32 to vector<128x128xf32>
      %23 = arith.select %21, %10, %22 : vector<128x128xi1>, vector<128x128xf32>
      %24 = arith.mulf %23, %23 : vector<128x128xf32>
      %c0_11 = arith.constant 0 : index
      %c0_12 = arith.constant 0 : index
      %25 = vector.load %arg11[%c0_11, %c0_12] : memref<128x128xf32, #tpu.memory_space<vmem>>, vector<128x128xf32>
      %26 = arith.addf %25, %23 : vector<128x128xf32>
      %c0_13 = arith.constant 0 : index
      %c0_14 = arith.constant 0 : index
      %27 = vector.load %arg11[%c0_13, %c0_14] : memref<128x128xf32, #tpu.memory_space<vmem>>, vector<128x128xf32>
      tpu.vector_store %arg11[%c0_13, %c0_14], %26 {strides = array<i32>} : memref<128x128xf32, #tpu.memory_space<vmem>>, vector<128x128xf32>,
      %c0_15 = arith.constant 0 : index
      %c0_16 = arith.constant 0 : index
      %28 = vector.load %arg12[%c0_15, %c0_16] : memref<128x128xf32, #tpu.memory_space<vmem>>, vector<128x128xf32>
      %29 = arith.addf %28, %24 : vector<128x128xf32>
      %c0_17 = arith.constant 0 : index
      %c0_18 = arith.constant 0 : index
      %30 = vector.load %arg12[%c0_17, %c0_18] : memref<128x128xf32, #tpu.memory_space<vmem>>, vector<128x128xf32>
      tpu.vector_store %arg12[%c0_17, %c0_18], %29 {strides = array<i32>} : memref<128x128xf32, #tpu.memory_space<vmem>>, vector<128x128xf32>,
    } else {
    }
    %c1_i32 = arith.constant 1 : i32
    %14 = arith.cmpi eq, %arg0, %c1_i32 : i32
    %15 = arith.extui %14 : i1 to i32
    %c0_i32_9 = arith.constant 0 : i32
    %16 = arith.cmpi ne, %15, %c0_i32_9 : i32
    scf.if %16 {
      %c0_10 = arith.constant 0 : index
      %c0_11 = arith.constant 0 : index
      %17 = vector.load %arg4[%c0_10, %c0_11] : memref<128x128xf32, #tpu.memory_space<vmem>>, vector<128x128xf32>
      %c0_12 = arith.constant 0 : index
      %c0_13 = arith.constant 0 : index
      %18 = vector.load %arg11[%c0_12, %c0_13] : memref<128x128xf32, #tpu.memory_space<vmem>>, vector<128x128xf32>
      %cst_14 = arith.constant dense<0.000000e+00> : vector<128x128xf32>
      %19 = tpu.matmul %17, %18, %cst_14 {dimension_numbers = #tpu.dot_dimension_numbers<[1], [0], [0], [1], [0, 0, 1, 1], [], []>} : vector<128x128xf32>, vector<128x128xf32>, vector<128x128xf32> -> vector<128x128xf32>
      %cst_15 = arith.constant dense<0.000000e+00> : vector<128xf32>
      %20 = vector.multi_reduction <add>, %19, %cst_15 [1] : vector<128x128xf32> to vector<128xf32>
      %21 = vector.shape_cast %20 : vector<128xf32> to vector<128x1xf32>
      %c0_16 = arith.constant 0 : index
      %c0_17 = arith.constant 0 : index
      %22 = vector.load %arg4[%c0_16, %c0_17] : memref<128x128xf32, #tpu.memory_space<vmem>>, vector<128x128xf32>
      %c0_18 = arith.constant 0 : index
      %c0_19 = arith.constant 0 : index
      %23 = vector.load %arg12[%c0_18, %c0_19] : memref<128x128xf32, #tpu.memory_space<vmem>>, vector<128x128xf32>
      %cst_20 = arith.constant dense<0.000000e+00> : vector<128x128xf32>
      %24 = tpu.matmul %22, %23, %cst_20 {dimension_numbers = #tpu.dot_dimension_numbers<[1], [0], [0], [1], [0, 0, 1, 1], [], []>} : vector<128x128xf32>, vector<128x128xf32>, vector<128x128xf32> -> vector<128x128xf32>
      %cst_21 = arith.constant dense<0.000000e+00> : vector<128xf32>
      %25 = vector.multi_reduction <add>, %24, %cst_21 [1] : vector<128x128xf32> to vector<128xf32>
      %26 = vector.shape_cast %25 : vector<128xf32> to vector<128x1xf32>
      %cst_22 = arith.constant 0.0166666675 : f32
      %27 = vector.broadcast %cst_22 : f32 to vector<128x1xf32>
      %28 = arith.mulf %21, %27 : vector<128x1xf32>
      %cst_23 = arith.constant 0.0166666675 : f32
      %29 = vector.broadcast %cst_23 : f32 to vector<128x1xf32>
      %30 = arith.mulf %26, %29 : vector<128x1xf32>
      %31 = arith.mulf %28, %28 : vector<128x1xf32>
      %32 = arith.subf %30, %31 : vector<128x1xf32>
      %cst_24 = arith.constant 0.000000e+00 : f32
      %33 = vector.broadcast %cst_24 : f32 to vector<128x1xf32>
      %34 = arith.maximumf %32, %33 : vector<128x1xf32>
      %cst_25 = arith.constant 9.99999974E-6 : f32
      %35 = vector.broadcast %cst_25 : f32 to vector<128x1xf32>
      %36 = arith.addf %34, %35 : vector<128x1xf32>
      %37 = math.rsqrt %36 : vector<128x1xf32>
      %c0_26 = arith.constant 0 : index
      %c0_27 = arith.constant 0 : index
      %38 = vector.load %arg6[%c0_26, %c0_27] : memref<128x1xf32, #tpu.memory_space<vmem>>, vector<128x1xf32>
      %39 = arith.mulf %38, %37 : vector<128x1xf32>
      %c0_28 = arith.constant 0 : index
      %c0_29 = arith.constant 0 : index
      %40 = vector.load %arg7[%c0_28, %c0_29] : memref<128x1xf32, #tpu.memory_space<vmem>>, vector<128x1xf32>
      %41 = arith.mulf %28, %39 : vector<128x1xf32>
      %42 = arith.subf %40, %41 : vector<128x1xf32>
      %43 = vector.broadcast %39 : vector<128x1xf32> to vector<128x128xf32>
      %44 = arith.mulf %10, %43 : vector<128x128xf32>
      %45 = vector.broadcast %42 : vector<128x1xf32> to vector<128x128xf32>
      %46 = arith.addf %44, %45 : vector<128x128xf32>
      %cst_30 = arith.constant 0.000000e+00 : f32
      %47 = vector.broadcast %cst_30 : f32 to vector<128x128xf32>
      %48 = arith.maximumf %46, %47 : vector<128x128xf32>
      %c0_31 = arith.constant 0 : index
      %c0_32 = arith.constant 0 : index
      %49 = vector.load %arg8[%c0_31, %c0_32] : memref<128x1xf32, #tpu.memory_space<vmem>>, vector<128x1xf32>
      %50 = vector.broadcast %49 : vector<128x1xf32> to vector<128x128xf32>
      %51 = arith.mulf %48, %50 : vector<128x128xf32>
      %cst_33 = arith.constant dense<0.000000e+00> : vector<128xf32>
      %52 = vector.multi_reduction <add>, %51, %cst_33 [0] : vector<128x128xf32> to vector<128xf32>
      %53 = vector.shape_cast %52 : vector<128xf32> to vector<1x128xf32>
      %c0_34 = arith.constant 0 : index
      %c0_35 = arith.constant 0 : index
      %54 = vector.load %arg9[%c0_34, %c0_35] : memref<1x1xf32, #tpu.memory_space<vmem>>, vector<1x1xf32>
      %55 = vector.broadcast %54 : vector<1x1xf32> to vector<1x128xf32>
      %56 = arith.addf %53, %55 : vector<1x128xf32>
      %c0_36 = arith.constant 0 : index
      %c0_37 = arith.constant 0 : index
      %57 = vector.load %arg10[%c0_36, %c0_37] : memref<1x128xf32, #tpu.memory_space<vmem>>, vector<1x128xf32>
      tpu.vector_store %arg10[%c0_36, %c0_37], %56 {strides = array<i32>} : memref<1x128xf32, #tpu.memory_space<vmem>>, vector<1x128xf32>,
    } else {
    }
    return
  }
  func.func @transform_0(%arg0: i32, %arg1: i32) -> (i32, i32) {
    %c0_i32 = arith.constant 0 : i32
    %c0_i32_0 = arith.constant 0 : i32
    return %c0_i32, %arg1 : i32, i32
  }
  func.func @transform_1(%arg0: i32, %arg1: i32) -> (i32, i32) {
    %c0_i32 = arith.constant 0 : i32
    %c0_i32_0 = arith.constant 0 : i32
    %c0_i32_1 = arith.constant 0 : i32
    return %c0_i32, %c0_i32_0 : i32, i32
  }
  func.func @transform_2(%arg0: i32, %arg1: i32) -> (i32, i32) {
    %c0_i32 = arith.constant 0 : i32
    %c0_i32_0 = arith.constant 0 : i32
    %c0_i32_1 = arith.constant 0 : i32
    return %c0_i32, %c0_i32_0 : i32, i32
  }
  func.func @transform_3(%arg0: i32, %arg1: i32) -> (i32, i32) {
    %c0_i32 = arith.constant 0 : i32
    %c0_i32_0 = arith.constant 0 : i32
    %c0_i32_1 = arith.constant 0 : i32
    return %c0_i32, %c0_i32_0 : i32, i32
  }
  func.func @transform_4(%arg0: i32, %arg1: i32) -> (i32, i32) {
    %c0_i32 = arith.constant 0 : i32
    %c0_i32_0 = arith.constant 0 : i32
    %c0_i32_1 = arith.constant 0 : i32
    return %c0_i32, %c0_i32_0 : i32, i32
  }
  func.func @transform_5(%arg0: i32, %arg1: i32) -> (i32, i32) {
    %c0_i32 = arith.constant 0 : i32
    %c0_i32_0 = arith.constant 0 : i32
    %c0_i32_1 = arith.constant 0 : i32
    return %c0_i32, %c0_i32_0 : i32, i32
  }
  func.func @transform_6(%arg0: i32, %arg1: i32) -> (i32, i32) {
    %c0_i32 = arith.constant 0 : i32
    %c0_i32_0 = arith.constant 0 : i32
    %c0_i32_1 = arith.constant 0 : i32
    return %c0_i32, %c0_i32_0 : i32, i32
  }
  func.func @transform_7(%arg0: i32, %arg1: i32) -> (i32, i32) {
    %c0_i32 = arith.constant 0 : i32
    %c0_i32_0 = arith.constant 0 : i32
    %c0_i32_1 = arith.constant 0 : i32
    return %c0_i32, %c0_i32_0 : i32, i32
  }
  func.func @transform_8(%arg0: i32, %arg1: i32) -> (i32, i32) {
    %0 = arith.muli %arg1, %arg0 : i32
    %c0_i32 = arith.constant 0 : i32
    %c0_i32_0 = arith.constant 0 : i32
    return %c0_i32, %0 : i32, i32
  }
}

</mosaic_0001>

<llo_original>
// kernel: tpu_custom_call.1
$region0: #{tpu_custom_call.1}
  #allocation0 [shape = 'u32[]', space=smem, size = 0x4, offset = 0x4, fixed_abs, tag = 'smem constant byte address 0x4 - core index']
  #allocation1 [shape = 'u32[144,128]{1,0:T(1,128)}', space=vmem, size = 0x12000, scoped, tag = 'internal scratch']
  #allocation2 [shape = 'f32[128,128]{1,0:T(8,128)}', space=vmem, size = 0x10000, scoped, tag = 'scratch operand']
  #allocation3 [shape = 'f32[128,128]{1,0:T(8,128)}', space=vmem, size = 0x10000, scoped, tag = 'scratch operand']
  #allocation4 [shape = 'f32[1,1]{1,0:T(1,128)S(1)}', space=vmem, size = 0x200, scoped, tag = 'scoped memory for tpu_custom_call.1']
  %s0 = inlined_call_operand.vmem [shape: f32[96,128], index: 0, kind: input, shape index: {}]
  %s1 = inlined_call_operand.vmem [shape: f32[128,96], index: 1, kind: input, shape index: {}]
  %s2 = inlined_call_operand.vmem [shape: f32[128,128], index: 2, kind: input, shape index: {}]
  %s3 = inlined_call_operand.vmem [shape: f32[128,1], index: 3, kind: input, shape index: {}]
  %s4 = inlined_call_operand.vmem [shape: f32[128,1], index: 4, kind: input, shape index: {}]
  %s5 = inlined_call_operand.vmem [shape: f32[128,1], index: 5, kind: input, shape index: {}]
  %s6 = inlined_call_operand.vmem [shape: f32[128,1], index: 6, kind: input, shape index: {}]
  %s7 = inlined_call_operand.<no memory space> [shape: f32[1,1], index: 7, kind: input, shape index: {}]
  %s8 = inlined_call_operand.hbm [shape: f32[1,128], index: 8, kind: output, shape index: {}]
  %s9 = sld [smem:[#allocation0]]
  $region77: #{tpu_custom_call.1} parent=0
    _
  %s11 = ssub.s32 1, %s9
  %s12 = scalar_select 0, %s11, %s9
  %v13 = vstv %s7
  %14 = vst [vmem:[#allocation4] sm:$0x1] %v13
  $region1: #{tpu_custom_call.1} parent=0
    #allocation5 [shape = 'u8[1024]{0}', space=vmem, size = 0x400, scoped, tag = 'output window, operand 0']
    #allocation6 [shape = 's32[2]{0}', space=sflag, size = 0x8, scoped, tag = 'scoped memory for tpu_custom_call.1']
    %15 = vsyncpa [#allocation6], 0
    %s16 = scalar_lea.sflag [#allocation6], 1
    %17 = vsyncpa %s16, 0
    loop: start=0, step=1, limit=4
    $region2: #{tpu_custom_call.1} parent=1 // loop_pre_header
      _
    $region3: #{tpu_custom_call.1} parent=1 // loop_header
      %s19 = sphi 0, %s23
      %p20 = scmp.ge.s32.totalorder %s19, 4
      %s26 = sphi 0, %s38
      %s27 = sphi 0, %s34
      %s28 = sphi 0, %s26
      %s29 = sphi 0, %s27
      %s30 = sphi 0, %s28
      %s31 = sphi 0, %s29
      %s41 = sphi 0, %s43
      %s44 = sphi 0, %s41
      %s45 = sphi 0, %s44
      %s61 = sphi 0, %s45
      %s65 = sphi 0, %s65
      %s67 = sphi 0, %s65
      %s68 = sphi 0, %s67
      %s82 = sphi 0, %s68
      %s86 = sphi 0, %s86
      %s88 = sphi 0, %s86
      %s89 = sphi 0, %s88
      %s103 = sphi 0, %s89
      %s107 = sphi 0, %s107
      %s109 = sphi 0, %s107
      %s110 = sphi 0, %s109
      %s124 = sphi 0, %s110
      %s128 = sphi 0, %s128
      %s130 = sphi 0, %s128
      %s131 = sphi 0, %s130
      %s145 = sphi 0, %s131
      %s149 = sphi 0, %s149
      %s151 = sphi 0, %s149
      %s152 = sphi 0, %s151
      %s166 = sphi 0, %s152
      %s170 = sphi 0, %s170
      %s172 = sphi 0, %s170
      %s173 = sphi 0, %s172
      %s187 = sphi 0, %s173
      %s191 = sphi 0, %s191
      %s193 = sphi 0, %s191
      %s194 = sphi 0, %s193
      %s208 = sphi 0, %s194
      %s216 = sphi 0, %s218
      %s219 = sphi 0, %s216
      %s220 = sphi 0, %s219
      %s236 = sphi 0, %s220
    $region4: #{tpu_custom_call.1} parent=1 // loop_header_branch
      %22 = sbr.rel (%p20) target = $region8
    $region5: #{tpu_custom_call.1} parent=1 // loop_body
      %s24 = ssub.s32 %s19, 1
      %s25 = ssub.s32 %s19, 2
      %s32 = sadd.s32 1, %s27
      %p33 = scmp.ge.s32.totalorder %s32, 1
      %s34 = scalar_select %p33, 0, %s32
      %s35 = sadd.s32 1, %s26
      %s36 = scalar_select %p33, %s35, %s26
      %p37 = scmp.ge.s32.totalorder %s36, 2
      %s38 = scalar_select %p37, 0, %s36
      %s39 = ssub.s32 %s27, %s34
      %p40 = scmp.eq.s32.totalorder %s39, 0
      %s42 = sadd.s32 %s41, 1
      %s43 = scalar_select %p40, %s41, %s42
      %p46 = pneg %p40
      %p47 = scmp.eq.s32.totalorder %s19, 1
      %p48 = por %p46, %p47
      %p49 = scmp.ne.s32.totalorder %s41, %s44
      %p50 = scmp.eq.s32.totalorder %s19, 0
      %p51 = por %p49, %p50
      %p52 = scmp.ne.s32.totalorder %s41, %s44
      %p53 = scmp.eq.s32.totalorder %s24, 1
      %p54 = por %p52, %p53
      %p55 = scmp.ne.s32.totalorder %s44, %s45
      %p56 = scmp.eq.s32.totalorder %s24, 0
      %p57 = por %p55, %p56
      %p58 = scmp.ne.s32.totalorder %s44, %s45
      %p59 = scmp.eq.s32.totalorder %s25, 1
      %p60 = por %p58, %p59
      %p62 = scmp.ne.s32.totalorder %s45, %s61
      %p63 = scmp.eq.s32.totalorder %s25, 0
      %p64 = por %p62, %p63
      %s66 = sadd.s32 %s65, 1
      %p69 = scmp.eq.s32.totalorder %s19, 1
      %p70 = scmp.ne.s32.totalorder %s65, %s67
      %p71 = scmp.eq.s32.totalorder %s19, 0
      %p72 = por %p70, %p71
      %p73 = scmp.ne.s32.totalorder %s65, %s67
      %p74 = scmp.eq.s32.totalorder %s24, 1
      %p75 = por %p73, %p74
      %p76 = scmp.ne.s32.totalorder %s67, %s68
      %p77 = scmp.eq.s32.totalorder %s24, 0
      %p78 = por %p76, %p77
      %p79 = scmp.ne.s32.totalorder %s67, %s68
      %p80 = scmp.eq.s32.totalorder %s25, 1
      %p81 = por %p79, %p80
      %p83 = scmp.ne.s32.totalorder %s68, %s82
      %p84 = scmp.eq.s32.totalorder %s25, 0
      %p85 = por %p83, %p84
      %s87 = sadd.s32 %s86, 1
      %p90 = scmp.eq.s32.totalorder %s19, 1
      %p91 = scmp.ne.s32.totalorder %s86, %s88
      %p92 = scmp.eq.s32.totalorder %s19, 0
      %p93 = por %p91, %p92
      %p94 = scmp.ne.s32.totalorder %s86, %s88
      %p95 = scmp.eq.s32.totalorder %s24, 1
      %p96 = por %p94, %p95
      %p97 = scmp.ne.s32.totalorder %s88, %s89
      %p98 = scmp.eq.s32.totalorder %s24, 0
      %p99 = por %p97, %p98
      %p100 = scmp.ne.s32.totalorder %s88, %s89
      %p101 = scmp.eq.s32.totalorder %s25, 1
      %p102 = por %p100, %p101
      %p104 = scmp.ne.s32.totalorder %s89, %s103
      %p105 = scmp.eq.s32.totalorder %s25, 0
      %p106 = por %p104, %p105
      %s108 = sadd.s32 %s107, 1
      %p111 = scmp.eq.s32.totalorder %s19, 1
      %p112 = scmp.ne.s32.totalorder %s107, %s109
      %p113 = scmp.eq.s32.totalorder %s19, 0
      %p114 = por %p112, %p113
      %p115 = scmp.ne.s32.totalorder %s107, %s109
      %p116 = scmp.eq.s32.totalorder %s24, 1
      %p117 = por %p115, %p116
      %p118 = scmp.ne.s32.totalorder %s109, %s110
      %p119 = scmp.eq.s32.totalorder %s24, 0
      %p120 = por %p118, %p119
      %p121 = scmp.ne.s32.totalorder %s109, %s110
      %p122 = scmp.eq.s32.totalorder %s25, 1
      %p123 = por %p121, %p122
      %p125 = scmp.ne.s32.totalorder %s110, %s124
      %p126 = scmp.eq.s32.totalorder %s25, 0
      %p127 = por %p125, %p126
      %s129 = sadd.s32 %s128, 1
      %p132 = scmp.eq.s32.totalorder %s19, 1
      %p133 = scmp.ne.s32.totalorder %s128, %s130
      %p134 = scmp.eq.s32.totalorder %s19, 0
      %p135 = por %p133, %p134
      %p136 = scmp.ne.s32.totalorder %s128, %s130
      %p137 = scmp.eq.s32.totalorder %s24, 1
      %p138 = por %p136, %p137
      %p139 = scmp.ne.s32.totalorder %s130, %s131
      %p140 = scmp.eq.s32.totalorder %s24, 0
      %p141 = por %p139, %p140
      %p142 = scmp.ne.s32.totalorder %s130, %s131
      %p143 = scmp.eq.s32.totalorder %s25, 1
      %p144 = por %p142, %p143
      %p146 = scmp.ne.s32.totalorder %s131, %s145
      %p147 = scmp.eq.s32.totalorder %s25, 0
      %p148 = por %p146, %p147
      %s150 = sadd.s32 %s149, 1
      %p153 = scmp.eq.s32.totalorder %s19, 1
      %p154 = scmp.ne.s32.totalorder %s149, %s151
      %p155 = scmp.eq.s32.totalorder %s19, 0
      %p156 = por %p154, %p155
      %p157 = scmp.ne.s32.totalorder %s149, %s151
      %p158 = scmp.eq.s32.totalorder %s24, 1
      %p159 = por %p157, %p158
      %p160 = scmp.ne.s32.totalorder %s151, %s152
      %p161 = scmp.eq.s32.totalorder %s24, 0
      %p162 = por %p160, %p161
      %p163 = scmp.ne.s32.totalorder %s151, %s152
      %p164 = scmp.eq.s32.totalorder %s25, 1
      %p165 = por %p163, %p164
      %p167 = scmp.ne.s32.totalorder %s152, %s166
      %p168 = scmp.eq.s32.totalorder %s25, 0
      %p169 = por %p167, %p168
      %s171 = sadd.s32 %s170, 1
      %p174 = scmp.eq.s32.totalorder %s19, 1
      %p175 = scmp.ne.s32.totalorder %s170, %s172
      %p176 = scmp.eq.s32.totalorder %s19, 0
      %p177 = por %p175, %p176
      %p178 = scmp.ne.s32.totalorder %s170, %s172
      %p179 = scmp.eq.s32.totalorder %s24, 1
      %p180 = por %p178, %p179
      %p181 = scmp.ne.s32.totalorder %s172, %s173
      %p182 = scmp.eq.s32.totalorder %s24, 0
      %p183 = por %p181, %p182
      %p184 = scmp.ne.s32.totalorder %s172, %s173
      %p185 = scmp.eq.s32.totalorder %s25, 1
      %p186 = por %p184, %p185
      %p188 = scmp.ne.s32.totalorder %s173, %s187
      %p189 = scmp.eq.s32.totalorder %s25, 0
      %p190 = por %p188, %p189
      %s192 = sadd.s32 %s191, 1
      %p195 = scmp.eq.s32.totalorder %s19, 1
      %p196 = scmp.ne.s32.totalorder %s191, %s193
      %p197 = scmp.eq.s32.totalorder %s19, 0
      %p198 = por %p196, %p197
      %p199 = scmp.ne.s32.totalorder %s191, %s193
      %p200 = scmp.eq.s32.totalorder %s24, 1
      %p201 = por %p199, %p200
      %p202 = scmp.ne.s32.totalorder %s193, %s194
      %p203 = scmp.eq.s32.totalorder %s24, 0
      %p204 = por %p202, %p203
      %p205 = scmp.ne.s32.totalorder %s193, %s194
      %p206 = scmp.eq.s32.totalorder %s25, 1
      %p207 = por %p205, %p206
      %p209 = scmp.ne.s32.totalorder %s194, %s208
      %p210 = scmp.eq.s32.totalorder %s25, 0
      %p211 = por %p209, %p210
      %s212 = smul.u32 %s27, %s26
      %s213 = smul.u32 %s34, %s38
      %s214 = ssub.s32 %s212, %s213
      %p215 = scmp.eq.s32.totalorder %s214, 0
      %s217 = sadd.s32 %s216, 1
      %s218 = scalar_select %p215, %s216, %s217
      %p221 = pneg %p215
      %p222 = scmp.eq.s32.totalorder %s19, 1
      %p223 = por %p221, %p222
      %p224 = scmp.ne.s32.totalorder %s216, %s219
      %p225 = scmp.eq.s32.totalorder %s19, 0
      %p226 = por %p224, %p225
      %p227 = scmp.ne.s32.totalorder %s216, %s219
      %p228 = scmp.eq.s32.totalorder %s24, 1
      %p229 = por %p227, %p228
      %p230 = scmp.ne.s32.totalorder %s219, %s220
      %p231 = scmp.eq.s32.totalorder %s24, 0
      %p232 = por %p230, %p231
      %p233 = scmp.ne.s32.totalorder %s219, %s220
      %p234 = scmp.eq.s32.totalorder %s25, 1
      %p235 = por %p233, %p234
      %p237 = scmp.ne.s32.totalorder %s220, %s236
      %p238 = scmp.eq.s32.totalorder %s25, 0
      %p239 = por %p237, %p238
      %p240 = scmp.le.s32.totalorder 1, %s19
      %p241 = scmp.lt.s32.totalorder %s19, 3
      %p242 = pnand %p240, %p241
      %p243 = pneg %p242
      // Predicated region
      $region9: #{tpu_custom_call.1} parent=5 // pred_check
        _
      $region10: #{tpu_custom_call.1} parent=5 // pred_check_branch
        %245 = sbr.rel (%p242) target = $region12
      $region11: #{tpu_custom_call.1} parent=5 // pred_region
        %s246 = ssub.s32 %s19, 1
        // Predicated region
        $region13: #{tpu_custom_call.1} parent=11 // pred_check
          %p247 = pneg %p57
        $region14: #{tpu_custom_call.1} parent=11 // pred_check_branch
          %249 = sbr.rel (%p247) target = $region16
        $region15: #{tpu_custom_call.1} parent=11 // pred_region
          %p250 = scmp.lt.s32.totalorder %s29, 0
          %s251 = scalar_select %p250, %s29, 0
          %s252 = smul.addr %s251, 8
          %s253 = scalar_lea.vmem %s0, %s252
        $region16: #{tpu_custom_call.1} parent=11 // pred_fallthru
          _
        // Predicated region
        $region17: #{tpu_custom_call.1} parent=11 // pred_check
          %p254 = pneg %p78
        $region18: #{tpu_custom_call.1} parent=11 // pred_check_branch
          %256 = sbr.rel (%p254) target = $region20
        $region19: #{tpu_custom_call.1} parent=11 // pred_region
          _
        $region20: #{tpu_custom_call.1} parent=11 // pred_fallthru
          _
        // Predicated region
        $region21: #{tpu_custom_call.1} parent=11 // pred_check
          %p257 = pneg %p99
        $region22: #{tpu_custom_call.1} parent=11 // pred_check_branch
          %259 = sbr.rel (%p257) target = $region24
        $region23: #{tpu_custom_call.1} parent=11 // pred_region
          _
        $region24: #{tpu_custom_call.1} parent=11 // pred_fallthru
          _
        // Predicated region
        $region25: #{tpu_custom_call.1} parent=11 // pred_check
          %p260 = pneg %p120
        $region26: #{tpu_custom_call.1} parent=11 // pred_check_branch
          %262 = sbr.rel (%p260) target = $region28
        $region27: #{tpu_custom_call.1} parent=11 // pred_region
          _
        $region28: #{tpu_custom_call.1} parent=11 // pred_fallthru
          _
        // Predicated region
        $region29: #{tpu_custom_call.1} parent=11 // pred_check
          %p263 = pneg %p141
        $region30: #{tpu_custom_call.1} parent=11 // pred_check_branch
          %265 = sbr.rel (%p263) target = $region32
        $region31: #{tpu_custom_call.1} parent=11 // pred_region
          _
        $region32: #{tpu_custom_call.1} parent=11 // pred_fallthru
          _
        // Predicated region
        $region33: #{tpu_custom_call.1} parent=11 // pred_check
          %p266 = pneg %p162
        $region34: #{tpu_custom_call.1} parent=11 // pred_check_branch
          %268 = sbr.rel (%p266) target = $region36
        $region35: #{tpu_custom_call.1} parent=11 // pred_region
          _
        $region36: #{tpu_custom_call.1} parent=11 // pred_fallthru
          _
        // Predicated region
        $region37: #{tpu_custom_call.1} parent=11 // pred_check
          %p269 = pneg %p183
        $region38: #{tpu_custom_call.1} parent=11 // pred_check_branch
          %271 = sbr.rel (%p269) target = $region40
        $region39: #{tpu_custom_call.1} parent=11 // pred_region
          _
        $region40: #{tpu_custom_call.1} parent=11 // pred_fallthru
          _
        // Predicated region
        $region41: #{tpu_custom_call.1} parent=11 // pred_check
          %p272 = pneg %p204
        $region42: #{tpu_custom_call.1} parent=11 // pred_check_branch
          %274 = sbr.rel (%p272) target = $region44
        $region43: #{tpu_custom_call.1} parent=11 // pred_region
          _
        $region44: #{tpu_custom_call.1} parent=11 // pred_fallthru
          _
      $region12: #{tpu_custom_call.1} parent=5 // pred_fallthru
        _
      %p275 = scmp.lt.s32.totalorder %s19, 2
      // Predicated region
      $region45: #{tpu_custom_call.1} parent=5 // pred_check
        %p276 = pneg %p275
      $region46: #{tpu_custom_call.1} parent=5 // pred_check_branch
        %278 = sbr.rel (%p276) target = $region48
      $region47: #{tpu_custom_call.1} parent=5 // pred_region
        _
      $region48: #{tpu_custom_call.1} parent=5 // pred_fallthru
        _
      %p279 = scmp.le.s32.totalorder 1, %s19
      %p280 = scmp.lt.s32.totalorder %s19, 3
      %p281 = pnand %p279, %p280
      %p282 = pneg %p281
      // Predicated region
      $region49: #{tpu_custom_call.1} parent=5 // pred_check
        _
      $region50: #{tpu_custom_call.1} parent=5 // pred_check_branch
        %284 = sbr.rel (%p281) target = $region52
      $region51: #{tpu_custom_call.1} parent=5 // pred_region
        %s285 = ssub.s32 %s19, 1
        %p286 = scmp.lt.s32.totalorder %s29, 0
        %s287 = scalar_select %p286, %s29, 0
        %s288 = smul.addr %s287, 8
        %s289 = scalar_lea.vmem %s0, %s288
        %p290 = pneg %p57
        %p291 = pneg %p54
        %p292 = pneg %p78
        %p293 = pneg %p75
        %p294 = pneg %p99
        %p295 = pneg %p96
        %p296 = pneg %p120
        %p297 = pneg %p117
        %p298 = pneg %p141
        %p299 = pneg %p138
        %p300 = pneg %p162
        %p301 = pneg %p159
        %p302 = pneg %p183
        %p303 = pneg %p180
        %p304 = pneg %p204
        %p305 = pneg %p201
        %p306 = pneg %p232
        %p307 = pneg %p229
        %s308 = sand.u32 %s219, 1
        %s309 = scalar_lea.sflag [#allocation6], %s308
        %s310 = sand.u32 %s219, 1
        %s311 = scalar_lea.vmem [#allocation5], %s310
        %p312 = scmp.lt.s32.totalorder %s29, 0
        %s313 = scalar_select %p312, %s29, 0
        %s314 = smul.addr %s313, 8
        %s315 = scalar_lea.vmem %s0, %s314
        %s316 = smul.u32 %s29, %s28
        %p317 = scmp.eq.s32.totalorder %s28, 0
        %p318 = scmp.eq.s32.totalorder %s29, 0
        %p319 = pnand %p317, %p318
        %p320 = pneg %p319
        // Predicated region
        $region53: #{tpu_custom_call.1} parent=51 // pred_check
          _
        $region54: #{tpu_custom_call.1} parent=51 // pred_check_branch
          %322 = sbr.rel (%p319) target = $region56
        $region55: #{tpu_custom_call.1} parent=51 // pred_region
          %323 = vst [vmem:[#allocation2] sm:$0xff] 0.0
          %324 = vst [vmem:[#allocation2 + $0x8] sm:$0xff] 0.0
          %325 = vst [vmem:[#allocation2 + $0x10] sm:$0xff] 0.0
          %326 = vst [vmem:[#allocation2 + $0x18] sm:$0xff] 0.0
          %327 = vst [vmem:[#allocation2 + $0x20] sm:$0xff] 0.0
          %328 = vst [vmem:[#allocation2 + $0x28] sm:$0xff] 0.0
          %329 = vst [vmem:[#allocation2 + $0x30] sm:$0xff] 0.0
          %330 = vst [vmem:[#allocation2 + $0x38] sm:$0xff] 0.0
          %331 = vst [vmem:[#allocation2 + $0x40] sm:$0xff] 0.0
          %332 = vst [vmem:[#allocation2 + $0x48] sm:$0xff] 0.0
          %333 = vst [vmem:[#allocation2 + $0x50] sm:$0xff] 0.0
          %334 = vst [vmem:[#allocation2 + $0x58] sm:$0xff] 0.0
          %335 = vst [vmem:[#allocation2 + $0x60] sm:$0xff] 0.0
          %336 = vst [vmem:[#allocation2 + $0x68] sm:$0xff] 0.0
          %337 = vst [vmem:[#allocation2 + $0x70] sm:$0xff] 0.0
          %338 = vst [vmem:[#allocation2 + $0x78] sm:$0xff] 0.0
          %339 = vst [vmem:[#allocation3] sm:$0xff] 0.0
          %340 = vst [vmem:[#allocation3 + $0x8] sm:$0xff] 0.0
          %341 = vst [vmem:[#allocation3 + $0x10] sm:$0xff] 0.0
          %342 = vst [vmem:[#allocation3 + $0x18] sm:$0xff] 0.0
          %343 = vst [vmem:[#allocation3 + $0x20] sm:$0xff] 0.0
          %344 = vst [vmem:[#allocation3 + $0x28] sm:$0xff] 0.0
          %345 = vst [vmem:[#allocation3 + $0x30] sm:$0xff] 0.0
          %346 = vst [vmem:[#allocation3 + $0x38] sm:$0xff] 0.0
          %347 = vst [vmem:[#allocation3 + $0x40] sm:$0xff] 0.0
          %348 = vst [vmem:[#allocation3 + $0x48] sm:$0xff] 0.0
          %349 = vst [vmem:[#allocation3 + $0x50] sm:$0xff] 0.0
          %350 = vst [vmem:[#allocation3 + $0x58] sm:$0xff] 0.0
          %351 = vst [vmem:[#allocation3 + $0x60] sm:$0xff] 0.0
          %352 = vst [vmem:[#allocation3 + $0x68] sm:$0xff] 0.0
          %353 = vst [vmem:[#allocation3 + $0x70] sm:$0xff] 0.0
          %354 = vst [vmem:[#allocation3 + $0x78] sm:$0xff] 0.0
        $region56: #{tpu_custom_call.1} parent=51 // pred_fallthru
          _
        %v355 = vld [vmem:[%s1] sm:$0xff]
        %v356 = vld [vmem:[%s1 + $0x8] sm:$0xff]
        %v357 = vld [vmem:[%s1 + $0x10] sm:$0xff]
        %v358 = vld [vmem:[%s1 + $0x18] sm:$0xff]
        %v359 = vld [vmem:[%s1 + $0x20] sm:$0xff]
        %v360 = vld [vmem:[%s1 + $0x28] sm:$0xff]
        %v361 = vld [vmem:[%s1 + $0x30] sm:$0xff]
        %v362 = vld [vmem:[%s1 + $0x38] sm:$0xff]
        %v363 = vld [vmem:[%s1 + $0x40] sm:$0xff]
        %v364 = vld [vmem:[%s1 + $0x48] sm:$0xff]
        %v365 = vld [vmem:[%s1 + $0x50] sm:$0xff]
        %v366 = vld [vmem:[%s1 + $0x58] sm:$0xff]
        %v367 = vld [vmem:[%s1 + $0x60] sm:$0xff]
        %v368 = vld [vmem:[%s1 + $0x68] sm:$0xff]
        %v369 = vld [vmem:[%s1 + $0x70] sm:$0xff]
        %v370 = vld [vmem:[%s1 + $0x78] sm:$0xff]
        %v371 = vld [vmem:[%s315] sm:$0xff]
        %v372 = vld [vmem:[%s315 + $0x8] sm:$0xff]
        %v373 = vld [vmem:[%s315 + $0x10] sm:$0xff]
        %v374 = vld [vmem:[%s315 + $0x18] sm:$0xff]
        %v375 = vld [vmem:[%s315 + $0x20] sm:$0xff]
        %v376 = vld [vmem:[%s315 + $0x28] sm:$0xff]
        %v377 = vld [vmem:[%s315 + $0x30] sm:$0xff]
        %v378 = vld [vmem:[%s315 + $0x38] sm:$0xff]
        %v379 = vld [vmem:[%s315 + $0x40] sm:$0xff]
        %v380 = vld [vmem:[%s315 + $0x48] sm:$0xff]
        %v381 = vld [vmem:[%s315 + $0x50] sm:$0xff]
        %v382 = vld [vmem:[%s315 + $0x58] sm:$0xff]
        %v383 = vld [vmem:[%s3] sm:$0xff]
        %v384 = vld [vmem:[%s3 + $0x8] sm:$0xff]
        %v385 = vld [vmem:[%s3 + $0x10] sm:$0xff]
        %v386 = vld [vmem:[%s3 + $0x18] sm:$0xff]
        %v387 = vld [vmem:[%s3 + $0x20] sm:$0xff]
        %v388 = vld [vmem:[%s3 + $0x28] sm:$0xff]
        %v389 = vld [vmem:[%s3 + $0x30] sm:$0xff]
        %v390 = vld [vmem:[%s3 + $0x38] sm:$0xff]
        %v391 = vld [vmem:[%s3 + $0x40] sm:$0xff]
        %v392 = vld [vmem:[%s3 + $0x48] sm:$0xff]
        %v393 = vld [vmem:[%s3 + $0x50] sm:$0xff]
        %v394 = vld [vmem:[%s3 + $0x58] sm:$0xff]
        %v395 = vld [vmem:[%s3 + $0x60] sm:$0xff]
        %v396 = vld [vmem:[%s3 + $0x68] sm:$0xff]
        %v397 = vld [vmem:[%s3 + $0x70] sm:$0xff]
        %v398 = vld [vmem:[%s3 + $0x78] sm:$0xff]
        %400 = vset.pattern.permute.xlu0 0
        %401 = vperm.xlu0 %400, %v383
        %v402 = vpop.permute.xlu0 %401
        %405 = vset.pattern.permute.xlu0 0
        %406 = vperm.xlu0 %405, %v384
        %v407 = vpop.permute.xlu0 %406
        %410 = vset.pattern.permute.xlu0 0
        %411 = vperm.xlu0 %410, %v385
        %v412 = vpop.permute.xlu0 %411
        %415 = vset.pattern.permute.xlu0 0
        %416 = vperm.xlu0 %415, %v386
        %v417 = vpop.permute.xlu0 %416
        %420 = vset.pattern.permute.xlu0 0
        %421 = vperm.xlu0 %420, %v387
        %v422 = vpop.permute.xlu0 %421
        %425 = vset.pattern.permute.xlu0 0
        %426 = vperm.xlu0 %425, %v388
        %v427 = vpop.permute.xlu0 %426
        %430 = vset.pattern.permute.xlu0 0
        %431 = vperm.xlu0 %430, %v389
        %v432 = vpop.permute.xlu0 %431
        %435 = vset.pattern.permute.xlu0 0
        %436 = vperm.xlu0 %435, %v390
        %v437 = vpop.permute.xlu0 %436
        %440 = vset.pattern.permute.xlu0 0
        %441 = vperm.xlu0 %440, %v391
        %v442 = vpop.permute.xlu0 %441
        %445 = vset.pattern.permute.xlu0 0
        %446 = vperm.xlu0 %445, %v392
        %v447 = vpop.permute.xlu0 %446
        %450 = vset.pattern.permute.xlu0 0
        %451 = vperm.xlu0 %450, %v393
        %v452 = vpop.permute.xlu0 %451
        %455 = vset.pattern.permute.xlu0 0
        %456 = vperm.xlu0 %455, %v394
        %v457 = vpop.permute.xlu0 %456
        %460 = vset.pattern.permute.xlu0 0
        %461 = vperm.xlu0 %460, %v395
        %v462 = vpop.permute.xlu0 %461
        %465 = vset.pattern.permute.xlu0 0
        %466 = vperm.xlu0 %465, %v396
        %v467 = vpop.permute.xlu0 %466
        %470 = vset.pattern.permute.xlu0 0
        %471 = vperm.xlu0 %470, %v397
        %v472 = vpop.permute.xlu0 %471
        %475 = vset.pattern.permute.xlu0 0
        %476 = vperm.xlu0 %475, %v398
        %v477 = vpop.permute.xlu0 %476
        %vm479 = vcmask 785408
        %v481 = vsel %vm479, %v355, 0
        %v484 = vsel %vm479, %v356, 0
        %v487 = vsel %vm479, %v357, 0
        %v490 = vsel %vm479, %v358, 0
        %v493 = vsel %vm479, %v359, 0
        %v496 = vsel %vm479, %v360, 0
        %v499 = vsel %vm479, %v361, 0
        %v502 = vsel %vm479, %v362, 0
        %v505 = vsel %vm479, %v363, 0
        %v508 = vsel %vm479, %v364, 0
        %v511 = vsel %vm479, %v365, 0
        %v514 = vsel %vm479, %v366, 0
        %v517 = vsel %vm479, %v367, 0
        %v520 = vsel %vm479, %v368, 0
        %v523 = vsel %vm479, %v369, 0
        %v526 = vsel %vm479, %v370, 0
        %528 = vmatprep.subr.mxu0 0.0
        %529 = vmatpush1.msra.mxu0 %v371
        %530 = vmatprep.subr.mxu0 0.0
        %531 = vmatpush1.msra.mxu0 %v372
        %532 = vmatprep.subr.mxu0 0.0
        %533 = vmatpush1.msra.mxu0 %v373
        %534 = vmatprep.subr.mxu0 0.0
        %535 = vmatpush1.msra.mxu0 %v374
        %536 = vmatprep.subr.mxu0 0.0
        %537 = vmatpush1.msra.mxu0 %v375
        %538 = vmatprep.subr.mxu0 0.0
        %539 = vmatpush1.msra.mxu0 %v376
        %540 = vmatprep.subr.mxu0 0.0
        %541 = vmatpush1.msra.mxu0 %v377
        %542 = vmatprep.subr.mxu0 0.0
        %543 = vmatpush1.msra.mxu0 %v378
        %544 = vmatprep.subr.mxu0 0.0
        %545 = vmatpush1.msra.mxu0 %v379
        %546 = vmatprep.subr.mxu0 0.0
        %547 = vmatpush1.msra.mxu0 %v380
        %548 = vmatprep.subr.mxu0 0.0
        %549 = vmatpush1.msra.mxu0 %v381
        %550 = vmatprep.subr.mxu0 0.0
        %551 = vmatpush1.msra.mxu0 %v382
        %552 = vmatprep.subr.mxu0 0.0
        %553 = vmatpush1.msra.mxu0 0.0
        %554 = vmatprep.subr.mxu0 0.0
        %555 = vmatpush1.msra.mxu0 0.0
        %556 = vmatprep.subr.mxu0 0.0
        %557 = vmatpush1.msra.mxu0 0.0
        %558 = vmatprep.subr.mxu0 0.0
        %559 = vmatpush1.msra.mxu0 0.0
        %560 = vmatprep.subr.mxu0 0.0
        %561 = vmatpush1.msra.mxu0 0.0
        %562 = vmatprep.subr.mxu0 0.0
        %563 = vmatpush1.msra.mxu0 0.0
        %564 = vmatprep.subr.mxu0 0.0
        %565 = vmatpush1.msra.mxu0 0.0
        %566 = vmatprep.subr.mxu0 0.0
        %567 = vmatpush1.msra.mxu0 0.0
        %568 = vmatprep.subr.mxu0 0.0
        %569 = vmatpush1.msra.mxu0 0.0
        %570 = vmatprep.subr.mxu0 0.0
        %571 = vmatpush1.msra.mxu0 0.0
        %572 = vmatprep.subr.mxu0 0.0
        %573 = vmatpush1.msra.mxu0 0.0
        %574 = vmatprep.subr.mxu0 0.0
        %575 = vmatpush1.msra.mxu0 0.0
        %576 = vmatprep.subr.mxu0 0.0
        %577 = vmatpush1.msra.mxu0 0.0
        %578 = vmatprep.subr.mxu0 0.0
        %579 = vmatpush1.msra.mxu0 0.0
        %580 = vmatprep.subr.mxu0 0.0
        %581 = vmatpush1.msra.mxu0 0.0
        %582 = vmatprep.subr.mxu0 0.0
        %583 = vmatpush1.msra.mxu0 0.0
        %584 = vmatprep.subr.mxu0 0.0
        %585 = vmatpush1.msra.mxu0 0.0
        %586 = vmatprep.subr.mxu0 0.0
        %587 = vmatpush1.msra.mxu0 0.0
        %588 = vmatprep.subr.mxu0 0.0
        %589 = vmatpush1.msra.mxu0 0.0
        %590 = vmatprep.subr.mxu0 0.0
        %591 = vmatpush1.msra.mxu0 0.0
        %592 = vmatprep.mubr.f32.mxu0 0.0
        %593 = vmatmul.mubr.f32.gmra.mrb[0].mxu0 %v481
        %v594 = vpop.f32.mrb[0].mxu0
        %v595 = vadd.f32 %v402, %v594
        %v596 = vpop.f32.mrb[0].mxu0
        %597 = vmatprep.mubr.f32.mxu0 0.0
        %598 = vmatmul.mubr.f32.gmra.mrb[0].mxu0 %v484
        %v599 = vpop.f32.mrb[0].mxu0
        %v600 = vadd.f32 %v407, %v599
        %v601 = vpop.f32.mrb[0].mxu0
        %602 = vmatprep.mubr.f32.mxu0 0.0
        %603 = vmatmul.mubr.f32.gmra.mrb[0].mxu0 %v487
        %v604 = vpop.f32.mrb[0].mxu0
        %v605 = vadd.f32 %v412, %v604
        %v606 = vpop.f32.mrb[0].mxu0
        %607 = vmatprep.mubr.f32.mxu0 0.0
        %608 = vmatmul.mubr.f32.gmra.mrb[0].mxu0 %v490
        %v609 = vpop.f32.mrb[0].mxu0
        %v610 = vadd.f32 %v417, %v609
        %v611 = vpop.f32.mrb[0].mxu0
        %612 = vmatprep.mubr.f32.mxu0 0.0
        %613 = vmatmul.mubr.f32.gmra.mrb[0].mxu0 %v493
        %v614 = vpop.f32.mrb[0].mxu0
        %v615 = vadd.f32 %v422, %v614
        %v616 = vpop.f32.mrb[0].mxu0
        %617 = vmatprep.mubr.f32.mxu0 0.0
        %618 = vmatmul.mubr.f32.gmra.mrb[0].mxu0 %v496
        %v619 = vpop.f32.mrb[0].mxu0
        %v620 = vadd.f32 %v427, %v619
        %v621 = vpop.f32.mrb[0].mxu0
        %622 = vmatprep.mubr.f32.mxu0 0.0
        %623 = vmatmul.mubr.f32.gmra.mrb[0].mxu0 %v499
        %v624 = vpop.f32.mrb[0].mxu0
        %v625 = vadd.f32 %v432, %v624
        %v626 = vpop.f32.mrb[0].mxu0
        %627 = vmatprep.mubr.f32.mxu0 0.0
        %628 = vmatmul.mubr.f32.gmra.mrb[0].mxu0 %v502
        %v629 = vpop.f32.mrb[0].mxu0
        %v630 = vadd.f32 %v437, %v629
        %v631 = vpop.f32.mrb[0].mxu0
        %632 = vmatprep.mubr.f32.mxu0 0.0
        %633 = vmatmul.mubr.f32.gmra.mrb[0].mxu0 %v505
        %v634 = vpop.f32.mrb[0].mxu0
        %v635 = vadd.f32 %v442, %v634
        %v636 = vpop.f32.mrb[0].mxu0
        %637 = vmatprep.mubr.f32.mxu0 0.0
        %638 = vmatmul.mubr.f32.gmra.mrb[0].mxu0 %v508
        %v639 = vpop.f32.mrb[0].mxu0
        %v640 = vadd.f32 %v447, %v639
        %v641 = vpop.f32.mrb[0].mxu0
        %642 = vmatprep.mubr.f32.mxu0 0.0
        %643 = vmatmul.mubr.f32.gmra.mrb[0].mxu0 %v511
        %v644 = vpop.f32.mrb[0].mxu0
        %v645 = vadd.f32 %v452, %v644
        %v646 = vpop.f32.mrb[0].mxu0
        %647 = vmatprep.mubr.f32.mxu0 0.0
        %648 = vmatmul.mubr.f32.gmra.mrb[0].mxu0 %v514
        %v649 = vpop.f32.mrb[0].mxu0
        %v650 = vadd.f32 %v457, %v649
        %v651 = vpop.f32.mrb[0].mxu0
        %652 = vmatprep.mubr.f32.mxu0 0.0
        %653 = vmatmul.mubr.f32.gmra.mrb[0].mxu0 %v517
        %v654 = vpop.f32.mrb[0].mxu0
        %v655 = vadd.f32 %v462, %v654
        %v656 = vpop.f32.mrb[0].mxu0
        %657 = vmatprep.mubr.f32.mxu0 0.0
        %658 = vmatmul.mubr.f32.gmra.mrb[0].mxu0 %v520
        %v659 = vpop.f32.mrb[0].mxu0
        %v660 = vadd.f32 %v467, %v659
        %v661 = vpop.f32.mrb[0].mxu0
        %662 = vmatprep.mubr.f32.mxu0 0.0
        %663 = vmatmul.mubr.f32.gmra.mrb[0].mxu0 %v523
        %v664 = vpop.f32.mrb[0].mxu0
        %v665 = vadd.f32 %v472, %v664
        %v666 = vpop.f32.mrb[0].mxu0
        %667 = vmatprep.mubr.f32.mxu0 0.0
        %668 = vmatmul.mubr.f32.gmra.mrb[0].mxu0 %v526
        %v669 = vpop.f32.mrb[0].mxu0
        %v670 = vadd.f32 %v477, %v669
        %v671 = vpop.f32.mrb[0].mxu0
        %672 = vdwg.mxu0
        // Predicated region
        $region57: #{tpu_custom_call.1} parent=51 // pred_check
          %p673 = pneg %p317
        $region58: #{tpu_custom_call.1} parent=51 // pred_check_branch
          %675 = sbr.rel (%p673) target = $region60
        $region59: #{tpu_custom_call.1} parent=51 // pred_region
          %v676 = vlaneseq
          %v677 = vand.u32 %v676, 127
          %s678 = smul.u32 %s29, 128
          %s679 = ssub.s32 2, %s678
          %v680 = vstv %s679
          %vm681 = vcmp.lt.s32.totalorder %v677, %v680
          %v682 = vsel %vm681, %v595, 0.0
          %v683 = vsel %vm681, %v600, 0.0
          %v684 = vsel %vm681, %v605, 0.0
          %v685 = vsel %vm681, %v610, 0.0
          %v686 = vsel %vm681, %v615, 0.0
          %v687 = vsel %vm681, %v620, 0.0
          %v688 = vsel %vm681, %v625, 0.0
          %v689 = vsel %vm681, %v630, 0.0
          %v690 = vsel %vm681, %v635, 0.0
          %v691 = vsel %vm681, %v640, 0.0
          %v692 = vsel %vm681, %v645, 0.0
          %v693 = vsel %vm681, %v650, 0.0
          %v694 = vsel %vm681, %v655, 0.0
          %v695 = vsel %vm681, %v660, 0.0
          %v696 = vsel %vm681, %v665, 0.0
          %v697 = vsel %vm681, %v670, 0.0
          %v698 = vmul.f32 %v682, %v682
          %v699 = vmul.f32 %v683, %v683
          %v700 = vmul.f32 %v684, %v684
          %v701 = vmul.f32 %v685, %v685
          %v702 = vmul.f32 %v686, %v686
          %v703 = vmul.f32 %v687, %v687
          %v704 = vmul.f32 %v688, %v688
          %v705 = vmul.f32 %v689, %v689
          %v706 = vmul.f32 %v690, %v690
          %v707 = vmul.f32 %v691, %v691
          %v708 = vmul.f32 %v692, %v692
          %v709 = vmul.f32 %v693, %v693
          %v710 = vmul.f32 %v694, %v694
          %v711 = vmul.f32 %v695, %v695
          %v712 = vmul.f32 %v696, %v696
          %v713 = vmul.f32 %v697, %v697
          %v714 = vld [vmem:[#allocation2] sm:$0xff]
          %v715 = vld [vmem:[#allocation2 + $0x8] sm:$0xff]
          %v716 = vld [vmem:[#allocation2 + $0x10] sm:$0xff]
          %v717 = vld [vmem:[#allocation2 + $0x18] sm:$0xff]
          %v718 = vld [vmem:[#allocation2 + $0x20] sm:$0xff]
          %v719 = vld [vmem:[#allocation2 + $0x28] sm:$0xff]
          %v720 = vld [vmem:[#allocation2 + $0x30] sm:$0xff]
          %v721 = vld [vmem:[#allocation2 + $0x38] sm:$0xff]
          %v722 = vld [vmem:[#allocation2 + $0x40] sm:$0xff]
          %v723 = vld [vmem:[#allocation2 + $0x48] sm:$0xff]
          %v724 = vld [vmem:[#allocation2 + $0x50] sm:$0xff]
          %v725 = vld [vmem:[#allocation2 + $0x58] sm:$0xff]
          %v726 = vld [vmem:[#allocation2 + $0x60] sm:$0xff]
          %v727 = vld [vmem:[#allocation2 + $0x68] sm:$0xff]
          %v728 = vld [vmem:[#allocation2 + $0x70] sm:$0xff]
          %v729 = vld [vmem:[#allocation2 + $0x78] sm:$0xff]
          %v730 = vadd.f32 %v714, %v682
          %v731 = vadd.f32 %v715, %v683
          %v732 = vadd.f32 %v716, %v684
          %v733 = vadd.f32 %v717, %v685
          %v734 = vadd.f32 %v718, %v686
          %v735 = vadd.f32 %v719, %v687
          %v736 = vadd.f32 %v720, %v688
          %v737 = vadd.f32 %v721, %v689
          %v738 = vadd.f32 %v722, %v690
          %v739 = vadd.f32 %v723, %v691
          %v740 = vadd.f32 %v724, %v692
          %v741 = vadd.f32 %v725, %v693
          %v742 = vadd.f32 %v726, %v694
          %v743 = vadd.f32 %v727, %v695
          %v744 = vadd.f32 %v728, %v696
          %v745 = vadd.f32 %v729, %v697
          %746 = vst [vmem:[#allocation2] sm:$0xff] %v730
          %747 = vst [vmem:[#allocation2 + $0x8] sm:$0xff] %v731
          %748 = vst [vmem:[#allocation2 + $0x10] sm:$0xff] %v732
          %749 = vst [vmem:[#allocation2 + $0x18] sm:$0xff] %v733
          %750 = vst [vmem:[#allocation2 + $0x20] sm:$0xff] %v734
          %751 = vst [vmem:[#allocation2 + $0x28] sm:$0xff] %v735
          %752 = vst [vmem:[#allocation2 + $0x30] sm:$0xff] %v736
          %753 = vst [vmem:[#allocation2 + $0x38] sm:$0xff] %v737
          %754 = vst [vmem:[#allocation2 + $0x40] sm:$0xff] %v738
          %755 = vst [vmem:[#allocation2 + $0x48] sm:$0xff] %v739
          %756 = vst [vmem:[#allocation2 + $0x50] sm:$0xff] %v740
          %757 = vst [vmem:[#allocation2 + $0x58] sm:$0xff] %v741
          %758 = vst [vmem:[#allocation2 + $0x60] sm:$0xff] %v742
          %759 = vst [vmem:[#allocation2 + $0x68] sm:$0xff] %v743
          %760 = vst [vmem:[#allocation2 + $0x70] sm:$0xff] %v744
          %761 = vst [vmem:[#allocation2 + $0x78] sm:$0xff] %v745
          %v762 = vld [vmem:[#allocation3] sm:$0xff]
          %v763 = vld [vmem:[#allocation3 + $0x8] sm:$0xff]
          %v764 = vld [vmem:[#allocation3 + $0x10] sm:$0xff]
          %v765 = vld [vmem:[#allocation3 + $0x18] sm:$0xff]
          %v766 = vld [vmem:[#allocation3 + $0x20] sm:$0xff]
          %v767 = vld [vmem:[#allocation3 + $0x28] sm:$0xff]
          %v768 = vld [vmem:[#allocation3 + $0x30] sm:$0xff]
          %v769 = vld [vmem:[#allocation3 + $0x38] sm:$0xff]
          %v770 = vld [vmem:[#allocation3 + $0x40] sm:$0xff]
          %v771 = vld [vmem:[#allocation3 + $0x48] sm:$0xff]
          %v772 = vld [vmem:[#allocation3 + $0x50] sm:$0xff]
          %v773 = vld [vmem:[#allocation3 + $0x58] sm:$0xff]
          %v774 = vld [vmem:[#allocation3 + $0x60] sm:$0xff]
          %v775 = vld [vmem:[#allocation3 + $0x68] sm:$0xff]
          %v776 = vld [vmem:[#allocation3 + $0x70] sm:$0xff]
          %v777 = vld [vmem:[#allocation3 + $0x78] sm:$0xff]
          %v778 = vadd.f32 %v762, %v698
          %v779 = vadd.f32 %v763, %v699
          %v780 = vadd.f32 %v764, %v700
          %v781 = vadd.f32 %v765, %v701
          %v782 = vadd.f32 %v766, %v702
          %v783 = vadd.f32 %v767, %v703
          %v784 = vadd.f32 %v768, %v704
          %v785 = vadd.f32 %v769, %v705
          %v786 = vadd.f32 %v770, %v706
          %v787 = vadd.f32 %v771, %v707
          %v788 = vadd.f32 %v772, %v708
          %v789 = vadd.f32 %v773, %v709
          %v790 = vadd.f32 %v774, %v710
          %v791 = vadd.f32 %v775, %v711
          %v792 = vadd.f32 %v776, %v712
          %v793 = vadd.f32 %v777, %v713
          %794 = vst [vmem:[#allocation3] sm:$0xff] %v778
          %795 = vst [vmem:[#allocation3 + $0x8] sm:$0xff] %v779
          %796 = vst [vmem:[#allocation3 + $0x10] sm:$0xff] %v780
          %797 = vst [vmem:[#allocation3 + $0x18] sm:$0xff] %v781
          %798 = vst [vmem:[#allocation3 + $0x20] sm:$0xff] %v782
          %799 = vst [vmem:[#allocation3 + $0x28] sm:$0xff] %v783
          %800 = vst [vmem:[#allocation3 + $0x30] sm:$0xff] %v784
          %801 = vst [vmem:[#allocation3 + $0x38] sm:$0xff] %v785
          %802 = vst [vmem:[#allocation3 + $0x40] sm:$0xff] %v786
          %803 = vst [vmem:[#allocation3 + $0x48] sm:$0xff] %v787
          %804 = vst [vmem:[#allocation3 + $0x50] sm:$0xff] %v788
          %805 = vst [vmem:[#allocation3 + $0x58] sm:$0xff] %v789
          %806 = vst [vmem:[#allocation3 + $0x60] sm:$0xff] %v790
          %807 = vst [vmem:[#allocation3 + $0x68] sm:$0xff] %v791
          %808 = vst [vmem:[#allocation3 + $0x70] sm:$0xff] %v792
          %809 = vst [vmem:[#allocation3 + $0x78] sm:$0xff] %v793
        $region60: #{tpu_custom_call.1} parent=51 // pred_fallthru
          _
        %p810 = scmp.eq.s32.totalorder %s28, 1
        // Predicated region
        $region61: #{tpu_custom_call.1} parent=51 // pred_check
          %p811 = pneg %p810
        $region62: #{tpu_custom_call.1} parent=51 // pred_check_branch
          %813 = sbr.rel (%p811) target = $region64
        $region63: #{tpu_custom_call.1} parent=51 // pred_region
          %v814 = vld [vmem:[%s2] sm:$0xff]
          %v815 = vld [vmem:[%s2 + $0x8] sm:$0xff]
          %v816 = vld [vmem:[%s2 + $0x10] sm:$0xff]
          %v817 = vld [vmem:[%s2 + $0x18] sm:$0xff]
          %v818 = vld [vmem:[%s2 + $0x20] sm:$0xff]
          %v819 = vld [vmem:[%s2 + $0x28] sm:$0xff]
          %v820 = vld [vmem:[%s2 + $0x30] sm:$0xff]
          %v821 = vld [vmem:[%s2 + $0x38] sm:$0xff]
          %v822 = vld [vmem:[%s2 + $0x40] sm:$0xff]
          %v823 = vld [vmem:[%s2 + $0x48] sm:$0xff]
          %v824 = vld [vmem:[%s2 + $0x50] sm:$0xff]
          %v825 = vld [vmem:[%s2 + $0x58] sm:$0xff]
          %v826 = vld [vmem:[%s2 + $0x60] sm:$0xff]
          %v827 = vld [vmem:[%s2 + $0x68] sm:$0xff]
          %v828 = vld [vmem:[%s2 + $0x70] sm:$0xff]
          %v829 = vld [vmem:[%s2 + $0x78] sm:$0xff]
          %v830 = vld [vmem:[#allocation2] sm:$0xff]
          %v831 = vld [vmem:[#allocation2 + $0x8] sm:$0xff]
          %v832 = vld [vmem:[#allocation2 + $0x10] sm:$0xff]
          %v833 = vld [vmem:[#allocation2 + $0x18] sm:$0xff]
          %v834 = vld [vmem:[#allocation2 + $0x20] sm:$0xff]
          %v835 = vld [vmem:[#allocation2 + $0x28] sm:$0xff]
          %v836 = vld [vmem:[#allocation2 + $0x30] sm:$0xff]
          %v837 = vld [vmem:[#allocation2 + $0x38] sm:$0xff]
          %v838 = vld [vmem:[#allocation2 + $0x40] sm:$0xff]
          %v839 = vld [vmem:[#allocation2 + $0x48] sm:$0xff]
          %v840 = vld [vmem:[#allocation2 + $0x50] sm:$0xff]
          %v841 = vld [vmem:[#allocation2 + $0x58] sm:$0xff]
          %v842 = vld [vmem:[#allocation2 + $0x60] sm:$0xff]
          %v843 = vld [vmem:[#allocation2 + $0x68] sm:$0xff]
          %v844 = vld [vmem:[#allocation2 + $0x70] sm:$0xff]
          %v845 = vld [vmem:[#allocation2 + $0x78] sm:$0xff]
          %846 = vmatprep.subr.mxu0 0.0
          %847 = vmatpush1.msra.mxu0 %v830
          %848 = vmatprep.subr.mxu0 0.0
          %849 = vmatpush1.msra.mxu0 %v831
          %850 = vmatprep.subr.mxu0 0.0
          %851 = vmatpush1.msra.mxu0 %v832
          %852 = vmatprep.subr.mxu0 0.0
          %853 = vmatpush1.msra.mxu0 %v833
          %854 = vmatprep.subr.mxu0 0.0
          %855 = vmatpush1.msra.mxu0 %v834
          %856 = vmatprep.subr.mxu0 0.0
          %857 = vmatpush1.msra.mxu0 %v835
          %858 = vmatprep.subr.mxu0 0.0
          %859 = vmatpush1.msra.mxu0 %v836
          %860 = vmatprep.subr.mxu0 0.0
          %861 = vmatpush1.msra.mxu0 %v837
          %862 = vmatprep.subr.mxu0 0.0
          %863 = vmatpush1.msra.mxu0 %v838
          %864 = vmatprep.subr.mxu0 0.0
          %865 = vmatpush1.msra.mxu0 %v839
          %866 = vmatprep.subr.mxu0 0.0
          %867 = vmatpush1.msra.mxu0 %v840
          %868 = vmatprep.subr.mxu0 0.0
          %869 = vmatpush1.msra.mxu0 %v841
          %870 = vmatprep.subr.mxu0 0.0
          %871 = vmatpush1.msra.mxu0 %v842
          %872 = vmatprep.subr.mxu0 0.0
          %873 = vmatpush1.msra.mxu0 %v843
          %874 = vmatprep.subr.mxu0 0.0
          %875 = vmatpush1.msra.mxu0 %v844
          %876 = vmatprep.subr.mxu0 0.0
          %877 = vmatpush1.msra.mxu0 %v845
          %878 = vmatprep.subr.mxu0 0.0
          %879 = vmatpush1.msra.mxu0 0.0
          %880 = vmatprep.subr.mxu0 0.0
          %881 = vmatpush1.msra.mxu0 0.0
          %882 = vmatprep.subr.mxu0 0.0
          %883 = vmatpush1.msra.mxu0 0.0
          %884 = vmatprep.subr.mxu0 0.0
          %885 = vmatpush1.msra.mxu0 0.0
          %886 = vmatprep.subr.mxu0 0.0
          %887 = vmatpush1.msra.mxu0 0.0
          %888 = vmatprep.subr.mxu0 0.0
          %889 = vmatpush1.msra.mxu0 0.0
          %890 = vmatprep.subr.mxu0 0.0
          %891 = vmatpush1.msra.mxu0 0.0
          %892 = vmatprep.subr.mxu0 0.0
          %893 = vmatpush1.msra.mxu0 0.0
          %894 = vmatprep.subr.mxu0 0.0
          %895 = vmatpush1.msra.mxu0 0.0
          %896 = vmatprep.subr.mxu0 0.0
          %897 = vmatpush1.msra.mxu0 0.0
          %898 = vmatprep.subr.mxu0 0.0
          %899 = vmatpush1.msra.mxu0 0.0
          %900 = vmatprep.subr.mxu0 0.0
          %901 = vmatpush1.msra.mxu0 0.0
          %902 = vmatprep.subr.mxu0 0.0
          %903 = vmatpush1.msra.mxu0 0.0
          %904 = vmatprep.subr.mxu0 0.0
          %905 = vmatpush1.msra.mxu0 0.0
          %906 = vmatprep.subr.mxu0 0.0
          %907 = vmatpush1.msra.mxu0 0.0
          %908 = vmatprep.subr.mxu0 0.0
          %909 = vmatpush1.msra.mxu0 0.0
          %910 = vmatprep.mubr.f32.mxu0 0.0
          %911 = vmatmul.mubr.f32.gmra.mrb[0].mxu0 %v814
          %v912 = vpop.f32.mrb[0].mxu0
          %v913 = vadd.f32 0.0, %v912
          %v914 = vpop.f32.mrb[0].mxu0
          %915 = vmatprep.mubr.f32.mxu0 0.0
          %916 = vmatmul.mubr.f32.gmra.mrb[0].mxu0 %v815
          %v917 = vpop.f32.mrb[0].mxu0
          %v918 = vadd.f32 0.0, %v917
          %v919 = vpop.f32.mrb[0].mxu0
          %920 = vmatprep.mubr.f32.mxu0 0.0
          %921 = vmatmul.mubr.f32.gmra.mrb[0].mxu0 %v816
          %v922 = vpop.f32.mrb[0].mxu0
          %v923 = vadd.f32 0.0, %v922
          %v924 = vpop.f32.mrb[0].mxu0
          %925 = vmatprep.mubr.f32.mxu0 0.0
          %926 = vmatmul.mubr.f32.gmra.mrb[0].mxu0 %v817
          %v927 = vpop.f32.mrb[0].mxu0
          %v928 = vadd.f32 0.0, %v927
          %v929 = vpop.f32.mrb[0].mxu0
          %930 = vmatprep.mubr.f32.mxu0 0.0
          %931 = vmatmul.mubr.f32.gmra.mrb[0].mxu0 %v818
          %v932 = vpop.f32.mrb[0].mxu0
          %v933 = vadd.f32 0.0, %v932
          %v934 = vpop.f32.mrb[0].mxu0
          %935 = vmatprep.mubr.f32.mxu0 0.0
          %936 = vmatmul.mubr.f32.gmra.mrb[0].mxu0 %v819
          %v937 = vpop.f32.mrb[0].mxu0
          %v938 = vadd.f32 0.0, %v937
          %v939 = vpop.f32.mrb[0].mxu0
          %940 = vmatprep.mubr.f32.mxu0 0.0
          %941 = vmatmul.mubr.f32.gmra.mrb[0].mxu0 %v820
          %v942 = vpop.f32.mrb[0].mxu0
          %v943 = vadd.f32 0.0, %v942
          %v944 = vpop.f32.mrb[0].mxu0
          %945 = vmatprep.mubr.f32.mxu0 0.0
          %946 = vmatmul.mubr.f32.gmra.mrb[0].mxu0 %v821
          %v947 = vpop.f32.mrb[0].mxu0
          %v948 = vadd.f32 0.0, %v947
          %v949 = vpop.f32.mrb[0].mxu0
          %950 = vmatprep.mubr.f32.mxu0 0.0
          %951 = vmatmul.mubr.f32.gmra.mrb[0].mxu0 %v822
          %v952 = vpop.f32.mrb[0].mxu0
          %v953 = vadd.f32 0.0, %v952
          %v954 = vpop.f32.mrb[0].mxu0
          %955 = vmatprep.mubr.f32.mxu0 0.0
          %956 = vmatmul.mubr.f32.gmra.mrb[0].mxu0 %v823
          %v957 = vpop.f32.mrb[0].mxu0
          %v958 = vadd.f32 0.0, %v957
          %v959 = vpop.f32.mrb[0].mxu0
          %960 = vmatprep.mubr.f32.mxu0 0.0
          %961 = vmatmul.mubr.f32.gmra.mrb[0].mxu0 %v824
          %v962 = vpop.f32.mrb[0].mxu0
          %v963 = vadd.f32 0.0, %v962
          %v964 = vpop.f32.mrb[0].mxu0
          %965 = vmatprep.mubr.f32.mxu0 0.0
          %966 = vmatmul.mubr.f32.gmra.mrb[0].mxu0 %v825
          %v967 = vpop.f32.mrb[0].mxu0
          %v968 = vadd.f32 0.0, %v967
          %v969 = vpop.f32.mrb[0].mxu0
          %970 = vmatprep.mubr.f32.mxu0 0.0
          %971 = vmatmul.mubr.f32.gmra.mrb[0].mxu0 %v826
          %v972 = vpop.f32.mrb[0].mxu0
          %v973 = vadd.f32 0.0, %v972
          %v974 = vpop.f32.mrb[0].mxu0
          %975 = vmatprep.mubr.f32.mxu0 0.0
          %976 = vmatmul.mubr.f32.gmra.mrb[0].mxu0 %v827
          %v977 = vpop.f32.mrb[0].mxu0
          %v978 = vadd.f32 0.0, %v977
          %v979 = vpop.f32.mrb[0].mxu0
          %980 = vmatprep.mubr.f32.mxu0 0.0
          %981 = vmatmul.mubr.f32.gmra.mrb[0].mxu0 %v828
          %v982 = vpop.f32.mrb[0].mxu0
          %v983 = vadd.f32 0.0, %v982
          %v984 = vpop.f32.mrb[0].mxu0
          %985 = vmatprep.mubr.f32.mxu0 0.0
          %986 = vmatmul.mubr.f32.gmra.mrb[0].mxu0 %v829
          %v987 = vpop.f32.mrb[0].mxu0
          %v988 = vadd.f32 0.0, %v987
          %v989 = vpop.f32.mrb[0].mxu0
          %990 = vdwg.mxu0
          %991 = vadd.xlane.f32.xlu0 %v913
          %v992 = vpop.xlane.xlu0 %991
          %993 = vadd.xlane.f32.xlu0 %v918
          %v994 = vpop.xlane.xlu0 %993
          %995 = vadd.xlane.f32.xlu0 %v923
          %v996 = vpop.xlane.xlu0 %995
          %997 = vadd.xlane.f32.xlu0 %v928
          %v998 = vpop.xlane.xlu0 %997
          %999 = vadd.xlane.f32.xlu0 %v933
          %v1000 = vpop.xlane.xlu0 %999
          %1001 = vadd.xlane.f32.xlu0 %v938
          %v1002 = vpop.xlane.xlu0 %1001
          %1003 = vadd.xlane.f32.xlu0 %v943
          %v1004 = vpop.xlane.xlu0 %1003
          %1005 = vadd.xlane.f32.xlu0 %v948
          %v1006 = vpop.xlane.xlu0 %1005
          %1007 = vadd.xlane.f32.xlu0 %v953
          %v1008 = vpop.xlane.xlu0 %1007
          %1009 = vadd.xlane.f32.xlu0 %v958
          %v1010 = vpop.xlane.xlu0 %1009
          %1011 = vadd.xlane.f32.xlu0 %v963
          %v1012 = vpop.xlane.xlu0 %1011
          %1013 = vadd.xlane.f32.xlu0 %v968
          %v1014 = vpop.xlane.xlu0 %1013
          %1015 = vadd.xlane.f32.xlu0 %v973
          %v1016 = vpop.xlane.xlu0 %1015
          %1017 = vadd.xlane.f32.xlu0 %v978
          %v1018 = vpop.xlane.xlu0 %1017
          %1019 = vadd.xlane.f32.xlu0 %v983
          %v1020 = vpop.xlane.xlu0 %1019
          %1021 = vadd.xlane.f32.xlu0 %v988
          %v1022 = vpop.xlane.xlu0 %1021
          %v1023 = vld [vmem:[#allocation3] sm:$0xff]
          %v1024 = vld [vmem:[#allocation3 + $0x8] sm:$0xff]
          %v1025 = vld [vmem:[#allocation3 + $0x10] sm:$0xff]
          %v1026 = vld [vmem:[#allocation3 + $0x18] sm:$0xff]
          %v1027 = vld [vmem:[#allocation3 + $0x20] sm:$0xff]
          %v1028 = vld [vmem:[#allocation3 + $0x28] sm:$0xff]
          %v1029 = vld [vmem:[#allocation3 + $0x30] sm:$0xff]
          %v1030 = vld [vmem:[#allocation3 + $0x38] sm:$0xff]
          %v1031 = vld [vmem:[#allocation3 + $0x40] sm:$0xff]
          %v1032 = vld [vmem:[#allocation3 + $0x48] sm:$0xff]
          %v1033 = vld [vmem:[#allocation3 + $0x50] sm:$0xff]
          %v1034 = vld [vmem:[#allocation3 + $0x58] sm:$0xff]
          %v1035 = vld [vmem:[#allocation3 + $0x60] sm:$0xff]
          %v1036 = vld [vmem:[#allocation3 + $0x68] sm:$0xff]
          %v1037 = vld [vmem:[#allocation3 + $0x70] sm:$0xff]
          %v1038 = vld [vmem:[#allocation3 + $0x78] sm:$0xff]
          %1039 = vmatprep.subr.mxu0 0.0
          %1040 = vmatpush1.msra.mxu0 %v1023
          %1041 = vmatprep.subr.mxu0 0.0
          %1042 = vmatpush1.msra.mxu0 %v1024
          %1043 = vmatprep.subr.mxu0 0.0
          %1044 = vmatpush1.msra.mxu0 %v1025
          %1045 = vmatprep.subr.mxu0 0.0
          %1046 = vmatpush1.msra.mxu0 %v1026
          %1047 = vmatprep.subr.mxu0 0.0
          %1048 = vmatpush1.msra.mxu0 %v1027
          %1049 = vmatprep.subr.mxu0 0.0
          %1050 = vmatpush1.msra.mxu0 %v1028
          %1051 = vmatprep.subr.mxu0 0.0
          %1052 = vmatpush1.msra.mxu0 %v1029
          %1053 = vmatprep.subr.mxu0 0.0
          %1054 = vmatpush1.msra.mxu0 %v1030
          %1055 = vmatprep.subr.mxu0 0.0
          %1056 = vmatpush1.msra.mxu0 %v1031
          %1057 = vmatprep.subr.mxu0 0.0
          %1058 = vmatpush1.msra.mxu0 %v1032
          %1059 = vmatprep.subr.mxu0 0.0
          %1060 = vmatpush1.msra.mxu0 %v1033
          %1061 = vmatprep.subr.mxu0 0.0
          %1062 = vmatpush1.msra.mxu0 %v1034
          %1063 = vmatprep.subr.mxu0 0.0
          %1064 = vmatpush1.msra.mxu0 %v1035
          %1065 = vmatprep.subr.mxu0 0.0
          %1066 = vmatpush1.msra.mxu0 %v1036
          %1067 = vmatprep.subr.mxu0 0.0
          %1068 = vmatpush1.msra.mxu0 %v1037
          %1069 = vmatprep.subr.mxu0 0.0
          %1070 = vmatpush1.msra.mxu0 %v1038
          %1071 = vmatprep.subr.mxu0 0.0
          %1072 = vmatpush1.msra.mxu0 0.0
          %1073 = vmatprep.subr.mxu0 0.0
          %1074 = vmatpush1.msra.mxu0 0.0
          %1075 = vmatprep.subr.mxu0 0.0
          %1076 = vmatpush1.msra.mxu0 0.0
          %1077 = vmatprep.subr.mxu0 0.0
          %1078 = vmatpush1.msra.mxu0 0.0
          %1079 = vmatprep.subr.mxu0 0.0
          %1080 = vmatpush1.msra.mxu0 0.0
          %1081 = vmatprep.subr.mxu0 0.0
          %1082 = vmatpush1.msra.mxu0 0.0
          %1083 = vmatprep.subr.mxu0 0.0
          %1084 = vmatpush1.msra.mxu0 0.0
          %1085 = vmatprep.subr.mxu0 0.0
          %1086 = vmatpush1.msra.mxu0 0.0
          %1087 = vmatprep.subr.mxu0 0.0
          %1088 = vmatpush1.msra.mxu0 0.0
          %1089 = vmatprep.subr.mxu0 0.0
          %1090 = vmatpush1.msra.mxu0 0.0
          %1091 = vmatprep.subr.mxu0 0.0
          %1092 = vmatpush1.msra.mxu0 0.0
          %1093 = vmatprep.subr.mxu0 0.0
          %1094 = vmatpush1.msra.mxu0 0.0
          %1095 = vmatprep.subr.mxu0 0.0
          %1096 = vmatpush1.msra.mxu0 0.0
          %1097 = vmatprep.subr.mxu0 0.0
          %1098 = vmatpush1.msra.mxu0 0.0
          %1099 = vmatprep.subr.mxu0 0.0
          %1100 = vmatpush1.msra.mxu0 0.0
          %1101 = vmatprep.subr.mxu0 0.0
          %1102 = vmatpush1.msra.mxu0 0.0
          %1103 = vmatprep.mubr.f32.mxu0 0.0
          %1104 = vmatmul.mubr.f32.gmra.mrb[0].mxu0 %v814
          %v1105 = vpop.f32.mrb[0].mxu0
          %v1106 = vadd.f32 0.0, %v1105
          %v1107 = vpop.f32.mrb[0].mxu0
          %1108 = vmatprep.mubr.f32.mxu0 0.0
          %1109 = vmatmul.mubr.f32.gmra.mrb[0].mxu0 %v815
          %v1110 = vpop.f32.mrb[0].mxu0
          %v1111 = vadd.f32 0.0, %v1110
          %v1112 = vpop.f32.mrb[0].mxu0
          %1113 = vmatprep.mubr.f32.mxu0 0.0
          %1114 = vmatmul.mubr.f32.gmra.mrb[0].mxu0 %v816
          %v1115 = vpop.f32.mrb[0].mxu0
          %v1116 = vadd.f32 0.0, %v1115
          %v1117 = vpop.f32.mrb[0].mxu0
          %1118 = vmatprep.mubr.f32.mxu0 0.0
          %1119 = vmatmul.mubr.f32.gmra.mrb[0].mxu0 %v817
          %v1120 = vpop.f32.mrb[0].mxu0
          %v1121 = vadd.f32 0.0, %v1120
          %v1122 = vpop.f32.mrb[0].mxu0
          %1123 = vmatprep.mubr.f32.mxu0 0.0
          %1124 = vmatmul.mubr.f32.gmra.mrb[0].mxu0 %v818
          %v1125 = vpop.f32.mrb[0].mxu0
          %v1126 = vadd.f32 0.0, %v1125
          %v1127 = vpop.f32.mrb[0].mxu0
          %1128 = vmatprep.mubr.f32.mxu0 0.0
          %1129 = vmatmul.mubr.f32.gmra.mrb[0].mxu0 %v819
          %v1130 = vpop.f32.mrb[0].mxu0
          %v1131 = vadd.f32 0.0, %v1130
          %v1132 = vpop.f32.mrb[0].mxu0
          %1133 = vmatprep.mubr.f32.mxu0 0.0
          %1134 = vmatmul.mubr.f32.gmra.mrb[0].mxu0 %v820
          %v1135 = vpop.f32.mrb[0].mxu0
          %v1136 = vadd.f32 0.0, %v1135
          %v1137 = vpop.f32.mrb[0].mxu0
          %1138 = vmatprep.mubr.f32.mxu0 0.0
          %1139 = vmatmul.mubr.f32.gmra.mrb[0].mxu0 %v821
          %v1140 = vpop.f32.mrb[0].mxu0
          %v1141 = vadd.f32 0.0, %v1140
          %v1142 = vpop.f32.mrb[0].mxu0
          %1143 = vmatprep.mubr.f32.mxu0 0.0
          %1144 = vmatmul.mubr.f32.gmra.mrb[0].mxu0 %v822
          %v1145 = vpop.f32.mrb[0].mxu0
          %v1146 = vadd.f32 0.0, %v1145
          %v1147 = vpop.f32.mrb[0].mxu0
          %1148 = vmatprep.mubr.f32.mxu0 0.0
          %1149 = vmatmul.mubr.f32.gmra.mrb[0].mxu0 %v823
          %v1150 = vpop.f32.mrb[0].mxu0
          %v1151 = vadd.f32 0.0, %v1150
          %v1152 = vpop.f32.mrb[0].mxu0
          %1153 = vmatprep.mubr.f32.mxu0 0.0
          %1154 = vmatmul.mubr.f32.gmra.mrb[0].mxu0 %v824
          %v1155 = vpop.f32.mrb[0].mxu0
          %v1156 = vadd.f32 0.0, %v1155
          %v1157 = vpop.f32.mrb[0].mxu0
          %1158 = vmatprep.mubr.f32.mxu0 0.0
          %1159 = vmatmul.mubr.f32.gmra.mrb[0].mxu0 %v825
          %v1160 = vpop.f32.mrb[0].mxu0
          %v1161 = vadd.f32 0.0, %v1160
          %v1162 = vpop.f32.mrb[0].mxu0
          %1163 = vmatprep.mubr.f32.mxu0 0.0
          %1164 = vmatmul.mubr.f32.gmra.mrb[0].mxu0 %v826
          %v1165 = vpop.f32.mrb[0].mxu0
          %v1166 = vadd.f32 0.0, %v1165
          %v1167 = vpop.f32.mrb[0].mxu0
          %1168 = vmatprep.mubr.f32.mxu0 0.0
          %1169 = vmatmul.mubr.f32.gmra.mrb[0].mxu0 %v827
          %v1170 = vpop.f32.mrb[0].mxu0
          %v1171 = vadd.f32 0.0, %v1170
          %v1172 = vpop.f32.mrb[0].mxu0
          %1173 = vmatprep.mubr.f32.mxu0 0.0
          %1174 = vmatmul.mubr.f32.gmra.mrb[0].mxu0 %v828
          %v1175 = vpop.f32.mrb[0].mxu0
          %v1176 = vadd.f32 0.0, %v1175
          %v1177 = vpop.f32.mrb[0].mxu0
          %1178 = vmatprep.mubr.f32.mxu0 0.0
          %1179 = vmatmul.mubr.f32.gmra.mrb[0].mxu0 %v829
          %v1180 = vpop.f32.mrb[0].mxu0
          %v1181 = vadd.f32 0.0, %v1180
          %v1182 = vpop.f32.mrb[0].mxu0
          %1183 = vdwg.mxu0
          %1184 = vadd.xlane.f32.xlu0 %v1106
          %v1185 = vpop.xlane.xlu0 %1184
          %1186 = vadd.xlane.f32.xlu0 %v1111
          %v1187 = vpop.xlane.xlu0 %1186
          %1188 = vadd.xlane.f32.xlu0 %v1116
          %v1189 = vpop.xlane.xlu0 %1188
          %1190 = vadd.xlane.f32.xlu0 %v1121
          %v1191 = vpop.xlane.xlu0 %1190
          %1192 = vadd.xlane.f32.xlu0 %v1126
          %v1193 = vpop.xlane.xlu0 %1192
          %1194 = vadd.xlane.f32.xlu0 %v1131
          %v1195 = vpop.xlane.xlu0 %1194
          %1196 = vadd.xlane.f32.xlu0 %v1136
          %v1197 = vpop.xlane.xlu0 %1196
          %1198 = vadd.xlane.f32.xlu0 %v1141
          %v1199 = vpop.xlane.xlu0 %1198
          %1200 = vadd.xlane.f32.xlu0 %v1146
          %v1201 = vpop.xlane.xlu0 %1200
          %1202 = vadd.xlane.f32.xlu0 %v1151
          %v1203 = vpop.xlane.xlu0 %1202
          %1204 = vadd.xlane.f32.xlu0 %v1156
          %v1205 = vpop.xlane.xlu0 %1204
          %1206 = vadd.xlane.f32.xlu0 %v1161
          %v1207 = vpop.xlane.xlu0 %1206
          %1208 = vadd.xlane.f32.xlu0 %v1166
          %v1209 = vpop.xlane.xlu0 %1208
          %1210 = vadd.xlane.f32.xlu0 %v1171
          %v1211 = vpop.xlane.xlu0 %1210
          %1212 = vadd.xlane.f32.xlu0 %v1176
          %v1213 = vpop.xlane.xlu0 %1212
          %1214 = vadd.xlane.f32.xlu0 %v1181
          %v1215 = vpop.xlane.xlu0 %1214
          %v1216 = vmul.f32 %v992, 0.016666668
          %v1217 = vmul.f32 %v994, 0.016666668
          %v1218 = vmul.f32 %v996, 0.016666668
          %v1219 = vmul.f32 %v998, 0.016666668
          %v1220 = vmul.f32 %v1000, 0.016666668
          %v1221 = vmul.f32 %v1002, 0.016666668
          %v1222 = vmul.f32 %v1004, 0.016666668
          %v1223 = vmul.f32 %v1006, 0.016666668
          %v1224 = vmul.f32 %v1008, 0.016666668
          %v1225 = vmul.f32 %v1010, 0.016666668
          %v1226 = vmul.f32 %v1012, 0.016666668
          %v1227 = vmul.f32 %v1014, 0.016666668
          %v1228 = vmul.f32 %v1016, 0.016666668
          %v1229 = vmul.f32 %v1018, 0.016666668
          %v1230 = vmul.f32 %v1020, 0.016666668
          %v1231 = vmul.f32 %v1022, 0.016666668
          %v1232 = vmul.f32 %v1185, 0.016666668
          %v1233 = vmul.f32 %v1187, 0.016666668
          %v1234 = vmul.f32 %v1189, 0.016666668
          %v1235 = vmul.f32 %v1191, 0.016666668
          %v1236 = vmul.f32 %v1193, 0.016666668
          %v1237 = vmul.f32 %v1195, 0.016666668
          %v1238 = vmul.f32 %v1197, 0.016666668
          %v1239 = vmul.f32 %v1199, 0.016666668
          %v1240 = vmul.f32 %v1201, 0.016666668
          %v1241 = vmul.f32 %v1203, 0.016666668
          %v1242 = vmul.f32 %v1205, 0.016666668
          %v1243 = vmul.f32 %v1207, 0.016666668
          %v1244 = vmul.f32 %v1209, 0.016666668
          %v1245 = vmul.f32 %v1211, 0.016666668
          %v1246 = vmul.f32 %v1213, 0.016666668
          %v1247 = vmul.f32 %v1215, 0.016666668
          %v1248 = vmul.f32 %v1216, %v1216
          %v1249 = vmul.f32 %v1217, %v1217
          %v1250 = vmul.f32 %v1218, %v1218
          %v1251 = vmul.f32 %v1219, %v1219
          %v1252 = vmul.f32 %v1220, %v1220
          %v1253 = vmul.f32 %v1221, %v1221
          %v1254 = vmul.f32 %v1222, %v1222
          %v1255 = vmul.f32 %v1223, %v1223
          %v1256 = vmul.f32 %v1224, %v1224
          %v1257 = vmul.f32 %v1225, %v1225
          %v1258 = vmul.f32 %v1226, %v1226
          %v1259 = vmul.f32 %v1227, %v1227
          %v1260 = vmul.f32 %v1228, %v1228
          %v1261 = vmul.f32 %v1229, %v1229
          %v1262 = vmul.f32 %v1230, %v1230
          %v1263 = vmul.f32 %v1231, %v1231
          %v1264 = vsub.f32 %v1232, %v1248
          %v1265 = vsub.f32 %v1233, %v1249
          %v1266 = vsub.f32 %v1234, %v1250
          %v1267 = vsub.f32 %v1235, %v1251
          %v1268 = vsub.f32 %v1236, %v1252
          %v1269 = vsub.f32 %v1237, %v1253
          %v1270 = vsub.f32 %v1238, %v1254
          %v1271 = vsub.f32 %v1239, %v1255
          %v1272 = vsub.f32 %v1240, %v1256
          %v1273 = vsub.f32 %v1241, %v1257
          %v1274 = vsub.f32 %v1242, %v1258
          %v1275 = vsub.f32 %v1243, %v1259
          %v1276 = vsub.f32 %v1244, %v1260
          %v1277 = vsub.f32 %v1245, %v1261
          %v1278 = vsub.f32 %v1246, %v1262
          %v1279 = vsub.f32 %v1247, %v1263
          %v1280 = vmax.f32 %v1264, 0.0
          %v1281 = vmax.f32 %v1265, 0.0
          %v1282 = vmax.f32 %v1266, 0.0
          %v1283 = vmax.f32 %v1267, 0.0
          %v1284 = vmax.f32 %v1268, 0.0
          %v1285 = vmax.f32 %v1269, 0.0
          %v1286 = vmax.f32 %v1270, 0.0
          %v1287 = vmax.f32 %v1271, 0.0
          %v1288 = vmax.f32 %v1272, 0.0
          %v1289 = vmax.f32 %v1273, 0.0
          %v1290 = vmax.f32 %v1274, 0.0
          %v1291 = vmax.f32 %v1275, 0.0
          %v1292 = vmax.f32 %v1276, 0.0
          %v1293 = vmax.f32 %v1277, 0.0
          %v1294 = vmax.f32 %v1278, 0.0
          %v1295 = vmax.f32 %v1279, 0.0
          %v1296 = vadd.f32 %v1280, 1e-05
          %v1297 = vadd.f32 %v1281, 1e-05
          %v1298 = vadd.f32 %v1282, 1e-05
          %v1299 = vadd.f32 %v1283, 1e-05
          %v1300 = vadd.f32 %v1284, 1e-05
          %v1301 = vadd.f32 %v1285, 1e-05
          %v1302 = vadd.f32 %v1286, 1e-05
          %v1303 = vadd.f32 %v1287, 1e-05
          %v1304 = vadd.f32 %v1288, 1e-05
          %v1305 = vadd.f32 %v1289, 1e-05
          %v1306 = vadd.f32 %v1290, 1e-05
          %v1307 = vadd.f32 %v1291, 1e-05
          %v1308 = vadd.f32 %v1292, 1e-05
          %v1309 = vadd.f32 %v1293, 1e-05
          %v1310 = vadd.f32 %v1294, 1e-05
          %v1311 = vadd.f32 %v1295, 1e-05
          %v1312 = vrsqrt.pop %v1296
          %v1313 = vrsqrt.pop %v1297
          %v1314 = vrsqrt.pop %v1298
          %v1315 = vrsqrt.pop %v1299
          %v1316 = vrsqrt.pop %v1300
          %v1317 = vrsqrt.pop %v1301
          %v1318 = vrsqrt.pop %v1302
          %v1319 = vrsqrt.pop %v1303
          %v1320 = vrsqrt.pop %v1304
          %v1321 = vrsqrt.pop %v1305
          %v1322 = vrsqrt.pop %v1306
          %v1323 = vrsqrt.pop %v1307
          %v1324 = vrsqrt.pop %v1308
          %v1325 = vrsqrt.pop %v1309
          %v1326 = vrsqrt.pop %v1310
          %v1327 = vrsqrt.pop %v1311
          %v1328 = vld [vmem:[%s4] sm:$0xff]
          %v1329 = vld [vmem:[%s4 + $0x8] sm:$0xff]
          %v1330 = vld [vmem:[%s4 + $0x10] sm:$0xff]
          %v1331 = vld [vmem:[%s4 + $0x18] sm:$0xff]
          %v1332 = vld [vmem:[%s4 + $0x20] sm:$0xff]
          %v1333 = vld [vmem:[%s4 + $0x28] sm:$0xff]
          %v1334 = vld [vmem:[%s4 + $0x30] sm:$0xff]
          %v1335 = vld [vmem:[%s4 + $0x38] sm:$0xff]
          %v1336 = vld [vmem:[%s4 + $0x40] sm:$0xff]
          %v1337 = vld [vmem:[%s4 + $0x48] sm:$0xff]
          %v1338 = vld [vmem:[%s4 + $0x50] sm:$0xff]
          %v1339 = vld [vmem:[%s4 + $0x58] sm:$0xff]
          %v1340 = vld [vmem:[%s4 + $0x60] sm:$0xff]
          %v1341 = vld [vmem:[%s4 + $0x68] sm:$0xff]
          %v1342 = vld [vmem:[%s4 + $0x70] sm:$0xff]
          %v1343 = vld [vmem:[%s4 + $0x78] sm:$0xff]
          %v1344 = vmul.f32 %v1328, %v1312
          %v1345 = vmul.f32 %v1329, %v1313
          %v1346 = vmul.f32 %v1330, %v1314
          %v1347 = vmul.f32 %v1331, %v1315
          %v1348 = vmul.f32 %v1332, %v1316
          %v1349 = vmul.f32 %v1333, %v1317
          %v1350 = vmul.f32 %v1334, %v1318
          %v1351 = vmul.f32 %v1335, %v1319
          %v1352 = vmul.f32 %v1336, %v1320
          %v1353 = vmul.f32 %v1337, %v1321
          %v1354 = vmul.f32 %v1338, %v1322
          %v1355 = vmul.f32 %v1339, %v1323
          %v1356 = vmul.f32 %v1340, %v1324
          %v1357 = vmul.f32 %v1341, %v1325
          %v1358 = vmul.f32 %v1342, %v1326
          %v1359 = vmul.f32 %v1343, %v1327
          %v1360 = vld [vmem:[%s5] sm:$0xff]
          %v1361 = vld [vmem:[%s5 + $0x8] sm:$0xff]
          %v1362 = vld [vmem:[%s5 + $0x10] sm:$0xff]
          %v1363 = vld [vmem:[%s5 + $0x18] sm:$0xff]
          %v1364 = vld [vmem:[%s5 + $0x20] sm:$0xff]
          %v1365 = vld [vmem:[%s5 + $0x28] sm:$0xff]
          %v1366 = vld [vmem:[%s5 + $0x30] sm:$0xff]
          %v1367 = vld [vmem:[%s5 + $0x38] sm:$0xff]
          %v1368 = vld [vmem:[%s5 + $0x40] sm:$0xff]
          %v1369 = vld [vmem:[%s5 + $0x48] sm:$0xff]
          %v1370 = vld [vmem:[%s5 + $0x50] sm:$0xff]
          %v1371 = vld [vmem:[%s5 + $0x58] sm:$0xff]
          %v1372 = vld [vmem:[%s5 + $0x60] sm:$0xff]
          %v1373 = vld [vmem:[%s5 + $0x68] sm:$0xff]
          %v1374 = vld [vmem:[%s5 + $0x70] sm:$0xff]
          %v1375 = vld [vmem:[%s5 + $0x78] sm:$0xff]
          %v1376 = vmul.f32 %v1216, %v1344
          %v1377 = vmul.f32 %v1217, %v1345
          %v1378 = vmul.f32 %v1218, %v1346
          %v1379 = vmul.f32 %v1219, %v1347
          %v1380 = vmul.f32 %v1220, %v1348
          %v1381 = vmul.f32 %v1221, %v1349
          %v1382 = vmul.f32 %v1222, %v1350
          %v1383 = vmul.f32 %v1223, %v1351
          %v1384 = vmul.f32 %v1224, %v1352
          %v1385 = vmul.f32 %v1225, %v1353
          %v1386 = vmul.f32 %v1226, %v1354
          %v1387 = vmul.f32 %v1227, %v1355
          %v1388 = vmul.f32 %v1228, %v1356
          %v1389 = vmul.f32 %v1229, %v1357
          %v1390 = vmul.f32 %v1230, %v1358
          %v1391 = vmul.f32 %v1231, %v1359
          %v1392 = vsub.f32 %v1360, %v1376
          %v1393 = vsub.f32 %v1361, %v1377
          %v1394 = vsub.f32 %v1362, %v1378
          %v1395 = vsub.f32 %v1363, %v1379
          %v1396 = vsub.f32 %v1364, %v1380
          %v1397 = vsub.f32 %v1365, %v1381
          %v1398 = vsub.f32 %v1366, %v1382
          %v1399 = vsub.f32 %v1367, %v1383
          %v1400 = vsub.f32 %v1368, %v1384
          %v1401 = vsub.f32 %v1369, %v1385
          %v1402 = vsub.f32 %v1370, %v1386
          %v1403 = vsub.f32 %v1371, %v1387
          %v1404 = vsub.f32 %v1372, %v1388
          %v1405 = vsub.f32 %v1373, %v1389
          %v1406 = vsub.f32 %v1374, %v1390
          %v1407 = vsub.f32 %v1375, %v1391
          %1409 = vset.pattern.permute.xlu0 0
          %1410 = vperm.xlu0 %1409, %v1344
          %v1411 = vpop.permute.xlu0 %1410
          %1414 = vset.pattern.permute.xlu0 0
          %1415 = vperm.xlu0 %1414, %v1345
          %v1416 = vpop.permute.xlu0 %1415
          %1419 = vset.pattern.permute.xlu0 0
          %1420 = vperm.xlu0 %1419, %v1346
          %v1421 = vpop.permute.xlu0 %1420
          %1424 = vset.pattern.permute.xlu0 0
          %1425 = vperm.xlu0 %1424, %v1347
          %v1426 = vpop.permute.xlu0 %1425
          %1429 = vset.pattern.permute.xlu0 0
          %1430 = vperm.xlu0 %1429, %v1348
          %v1431 = vpop.permute.xlu0 %1430
          %1434 = vset.pattern.permute.xlu0 0
          %1435 = vperm.xlu0 %1434, %v1349
          %v1436 = vpop.permute.xlu0 %1435
          %1439 = vset.pattern.permute.xlu0 0
          %1440 = vperm.xlu0 %1439, %v1350
          %v1441 = vpop.permute.xlu0 %1440
          %1444 = vset.pattern.permute.xlu0 0
          %1445 = vperm.xlu0 %1444, %v1351
          %v1446 = vpop.permute.xlu0 %1445
          %1449 = vset.pattern.permute.xlu0 0
          %1450 = vperm.xlu0 %1449, %v1352
          %v1451 = vpop.permute.xlu0 %1450
          %1454 = vset.pattern.permute.xlu0 0
          %1455 = vperm.xlu0 %1454, %v1353
          %v1456 = vpop.permute.xlu0 %1455
          %1459 = vset.pattern.permute.xlu0 0
          %1460 = vperm.xlu0 %1459, %v1354
          %v1461 = vpop.permute.xlu0 %1460
          %1464 = vset.pattern.permute.xlu0 0
          %1465 = vperm.xlu0 %1464, %v1355
          %v1466 = vpop.permute.xlu0 %1465
          %1469 = vset.pattern.permute.xlu0 0
          %1470 = vperm.xlu0 %1469, %v1356
          %v1471 = vpop.permute.xlu0 %1470
          %1474 = vset.pattern.permute.xlu0 0
          %1475 = vperm.xlu0 %1474, %v1357
          %v1476 = vpop.permute.xlu0 %1475
          %1479 = vset.pattern.permute.xlu0 0
          %1480 = vperm.xlu0 %1479, %v1358
          %v1481 = vpop.permute.xlu0 %1480
          %1484 = vset.pattern.permute.xlu0 0
          %1485 = vperm.xlu0 %1484, %v1359
          %v1486 = vpop.permute.xlu0 %1485
          %v1488 = vmul.f32 %v595, %v1411
          %v1489 = vmul.f32 %v600, %v1416
          %v1490 = vmul.f32 %v605, %v1421
          %v1491 = vmul.f32 %v610, %v1426
          %v1492 = vmul.f32 %v615, %v1431
          %v1493 = vmul.f32 %v620, %v1436
          %v1494 = vmul.f32 %v625, %v1441
          %v1495 = vmul.f32 %v630, %v1446
          %v1496 = vmul.f32 %v635, %v1451
          %v1497 = vmul.f32 %v640, %v1456
          %v1498 = vmul.f32 %v645, %v1461
          %v1499 = vmul.f32 %v650, %v1466
          %v1500 = vmul.f32 %v655, %v1471
          %v1501 = vmul.f32 %v660, %v1476
          %v1502 = vmul.f32 %v665, %v1481
          %v1503 = vmul.f32 %v670, %v1486
          %1505 = vset.pattern.permute.xlu0 0
          %1506 = vperm.xlu0 %1505, %v1392
          %v1507 = vpop.permute.xlu0 %1506
          %1510 = vset.pattern.permute.xlu0 0
          %1511 = vperm.xlu0 %1510, %v1393
          %v1512 = vpop.permute.xlu0 %1511
          %1515 = vset.pattern.permute.xlu0 0
          %1516 = vperm.xlu0 %1515, %v1394
          %v1517 = vpop.permute.xlu0 %1516
          %1520 = vset.pattern.permute.xlu0 0
          %1521 = vperm.xlu0 %1520, %v1395
          %v1522 = vpop.permute.xlu0 %1521
          %1525 = vset.pattern.permute.xlu0 0
          %1526 = vperm.xlu0 %1525, %v1396
          %v1527 = vpop.permute.xlu0 %1526
          %1530 = vset.pattern.permute.xlu0 0
          %1531 = vperm.xlu0 %1530, %v1397
          %v1532 = vpop.permute.xlu0 %1531
          %1535 = vset.pattern.permute.xlu0 0
          %1536 = vperm.xlu0 %1535, %v1398
          %v1537 = vpop.permute.xlu0 %1536
          %1540 = vset.pattern.permute.xlu0 0
          %1541 = vperm.xlu0 %1540, %v1399
          %v1542 = vpop.permute.xlu0 %1541
          %1545 = vset.pattern.permute.xlu0 0
          %1546 = vperm.xlu0 %1545, %v1400
          %v1547 = vpop.permute.xlu0 %1546
          %1550 = vset.pattern.permute.xlu0 0
          %1551 = vperm.xlu0 %1550, %v1401
          %v1552 = vpop.permute.xlu0 %1551
          %1555 = vset.pattern.permute.xlu0 0
          %1556 = vperm.xlu0 %1555, %v1402
          %v1557 = vpop.permute.xlu0 %1556
          %1560 = vset.pattern.permute.xlu0 0
          %1561 = vperm.xlu0 %1560, %v1403
          %v1562 = vpop.permute.xlu0 %1561
          %1565 = vset.pattern.permute.xlu0 0
          %1566 = vperm.xlu0 %1565, %v1404
          %v1567 = vpop.permute.xlu0 %1566
          %1570 = vset.pattern.permute.xlu0 0
          %1571 = vperm.xlu0 %1570, %v1405
          %v1572 = vpop.permute.xlu0 %1571
          %1575 = vset.pattern.permute.xlu0 0
          %1576 = vperm.xlu0 %1575, %v1406
          %v1577 = vpop.permute.xlu0 %1576
          %1580 = vset.pattern.permute.xlu0 0
          %1581 = vperm.xlu0 %1580, %v1407
          %v1582 = vpop.permute.xlu0 %1581
          %v1584 = vadd.f32 %v1488, %v1507
          %v1585 = vadd.f32 %v1489, %v1512
          %v1586 = vadd.f32 %v1490, %v1517
          %v1587 = vadd.f32 %v1491, %v1522
          %v1588 = vadd.f32 %v1492, %v1527
          %v1589 = vadd.f32 %v1493, %v1532
          %v1590 = vadd.f32 %v1494, %v1537
          %v1591 = vadd.f32 %v1495, %v1542
          %v1592 = vadd.f32 %v1496, %v1547
          %v1593 = vadd.f32 %v1497, %v1552
          %v1594 = vadd.f32 %v1498, %v1557
          %v1595 = vadd.f32 %v1499, %v1562
          %v1596 = vadd.f32 %v1500, %v1567
          %v1597 = vadd.f32 %v1501, %v1572
          %v1598 = vadd.f32 %v1502, %v1577
          %v1599 = vadd.f32 %v1503, %v1582
          %v1600 = vmax.f32 %v1584, 0.0
          %v1601 = vmax.f32 %v1585, 0.0
          %v1602 = vmax.f32 %v1586, 0.0
          %v1603 = vmax.f32 %v1587, 0.0
          %v1604 = vmax.f32 %v1588, 0.0
          %v1605 = vmax.f32 %v1589, 0.0
          %v1606 = vmax.f32 %v1590, 0.0
          %v1607 = vmax.f32 %v1591, 0.0
          %v1608 = vmax.f32 %v1592, 0.0
          %v1609 = vmax.f32 %v1593, 0.0
          %v1610 = vmax.f32 %v1594, 0.0
          %v1611 = vmax.f32 %v1595, 0.0
          %v1612 = vmax.f32 %v1596, 0.0
          %v1613 = vmax.f32 %v1597, 0.0
          %v1614 = vmax.f32 %v1598, 0.0
          %v1615 = vmax.f32 %v1599, 0.0
          %v1616 = vld [vmem:[%s6] sm:$0xff]
          %v1617 = vld [vmem:[%s6 + $0x8] sm:$0xff]
          %v1618 = vld [vmem:[%s6 + $0x10] sm:$0xff]
          %v1619 = vld [vmem:[%s6 + $0x18] sm:$0xff]
          %v1620 = vld [vmem:[%s6 + $0x20] sm:$0xff]
          %v1621 = vld [vmem:[%s6 + $0x28] sm:$0xff]
          %v1622 = vld [vmem:[%s6 + $0x30] sm:$0xff]
          %v1623 = vld [vmem:[%s6 + $0x38] sm:$0xff]
          %v1624 = vld [vmem:[%s6 + $0x40] sm:$0xff]
          %v1625 = vld [vmem:[%s6 + $0x48] sm:$0xff]
          %v1626 = vld [vmem:[%s6 + $0x50] sm:$0xff]
          %v1627 = vld [vmem:[%s6 + $0x58] sm:$0xff]
          %v1628 = vld [vmem:[%s6 + $0x60] sm:$0xff]
          %v1629 = vld [vmem:[%s6 + $0x68] sm:$0xff]
          %v1630 = vld [vmem:[%s6 + $0x70] sm:$0xff]
          %v1631 = vld [vmem:[%s6 + $0x78] sm:$0xff]
          %1633 = vset.pattern.permute.xlu0 0
          %1634 = vperm.xlu0 %1633, %v1616
          %v1635 = vpop.permute.xlu0 %1634
          %1638 = vset.pattern.permute.xlu0 0
          %1639 = vperm.xlu0 %1638, %v1617
          %v1640 = vpop.permute.xlu0 %1639
          %1643 = vset.pattern.permute.xlu0 0
          %1644 = vperm.xlu0 %1643, %v1618
          %v1645 = vpop.permute.xlu0 %1644
          %1648 = vset.pattern.permute.xlu0 0
          %1649 = vperm.xlu0 %1648, %v1619
          %v1650 = vpop.permute.xlu0 %1649
          %1653 = vset.pattern.permute.xlu0 0
          %1654 = vperm.xlu0 %1653, %v1620
          %v1655 = vpop.permute.xlu0 %1654
          %1658 = vset.pattern.permute.xlu0 0
          %1659 = vperm.xlu0 %1658, %v1621
          %v1660 = vpop.permute.xlu0 %1659
          %1663 = vset.pattern.permute.xlu0 0
          %1664 = vperm.xlu0 %1663, %v1622
          %v1665 = vpop.permute.xlu0 %1664
          %1668 = vset.pattern.permute.xlu0 0
          %1669 = vperm.xlu0 %1668, %v1623
          %v1670 = vpop.permute.xlu0 %1669
          %1673 = vset.pattern.permute.xlu0 0
          %1674 = vperm.xlu0 %1673, %v1624
          %v1675 = vpop.permute.xlu0 %1674
          %1678 = vset.pattern.permute.xlu0 0
          %1679 = vperm.xlu0 %1678, %v1625
          %v1680 = vpop.permute.xlu0 %1679
          %1683 = vset.pattern.permute.xlu0 0
          %1684 = vperm.xlu0 %1683, %v1626
          %v1685 = vpop.permute.xlu0 %1684
          %1688 = vset.pattern.permute.xlu0 0
          %1689 = vperm.xlu0 %1688, %v1627
          %v1690 = vpop.permute.xlu0 %1689
          %1693 = vset.pattern.permute.xlu0 0
          %1694 = vperm.xlu0 %1693, %v1628
          %v1695 = vpop.permute.xlu0 %1694
          %1698 = vset.pattern.permute.xlu0 0
          %1699 = vperm.xlu0 %1698, %v1629
          %v1700 = vpop.permute.xlu0 %1699
          %1703 = vset.pattern.permute.xlu0 0
          %1704 = vperm.xlu0 %1703, %v1630
          %v1705 = vpop.permute.xlu0 %1704
          %1708 = vset.pattern.permute.xlu0 0
          %1709 = vperm.xlu0 %1708, %v1631
          %v1710 = vpop.permute.xlu0 %1709
          %v1712 = vmul.f32 %v1600, %v1635
          %v1713 = vmul.f32 %v1601, %v1640
          %v1714 = vmul.f32 %v1602, %v1645
          %v1715 = vmul.f32 %v1603, %v1650
          %v1716 = vmul.f32 %v1604, %v1655
          %v1717 = vmul.f32 %v1605, %v1660
          %v1718 = vmul.f32 %v1606, %v1665
          %v1719 = vmul.f32 %v1607, %v1670
          %v1720 = vmul.f32 %v1608, %v1675
          %v1721 = vmul.f32 %v1609, %v1680
          %v1722 = vmul.f32 %v1610, %v1685
          %v1723 = vmul.f32 %v1611, %v1690
          %v1724 = vmul.f32 %v1612, %v1695
          %v1725 = vmul.f32 %v1613, %v1700
          %v1726 = vmul.f32 %v1614, %v1705
          %v1727 = vmul.f32 %v1615, %v1710
          %v1728 = vadd.f32 %v1712, %v1713
          %v1729 = vadd.f32 %v1728, %v1714
          %v1730 = vadd.f32 %v1729, %v1715
          %v1731 = vadd.f32 %v1730, %v1716
          %v1732 = vadd.f32 %v1731, %v1717
          %v1733 = vadd.f32 %v1732, %v1718
          %v1734 = vadd.f32 %v1733, %v1719
          %v1735 = vadd.f32 %v1734, %v1720
          %v1736 = vadd.f32 %v1735, %v1721
          %v1737 = vadd.f32 %v1736, %v1722
          %v1738 = vadd.f32 %v1737, %v1723
          %v1739 = vadd.f32 %v1738, %v1724
          %v1740 = vadd.f32 %v1739, %v1725
          %v1741 = vadd.f32 %v1740, %v1726
          %v1742 = vadd.f32 %v1741, %v1727
          %v1743 = vrot.slane %v1742, 4
          %v1744 = vadd.f32 %v1742, %v1743
          %v1745 = vrot.slane %v1744, 2
          %v1746 = vadd.f32 %v1744, %v1745
          %v1747 = vrot.slane %v1746, 1
          %v1748 = vadd.f32 %v1746, %v1747
          %v1749 = vld [vmem:[#allocation4] sm:$0x1]
          %1751 = vset.pattern.permute.xlu0 0
          %1752 = vperm.xlu0 %1751, %v1749
          %v1753 = vpop.permute.xlu0 %1752
          %v1755 = vlaneseq
          %v1756 = vshrl.u32 %v1755, 7
          %v1757 = vsub.s32 0, %v1756
          %v1758 = vrot.slane %v1753, %v1757
          %v1759 = vadd.f32 %v1748, %v1758
          %1760 = vst [vmem:[%s311] sm:$0x1] %v1759
        $region64: #{tpu_custom_call.1} parent=51 // pred_fallthru
          _
        %s1761 = sand.u32 %s219, 1
        %s1762 = scalar_lea.sflag [#allocation6], %s1761
        %s1763 = sand.u32 %s219, 1
        %s1764 = scalar_lea.vmem [#allocation5], %s1763
        // Predicated region
        $region65: #{tpu_custom_call.1} parent=51 // pred_check
          %p1765 = pneg %p229
        $region66: #{tpu_custom_call.1} parent=51 // pred_check_branch
          %1767 = sbr.rel (%p1765) target = $region68
        $region67: #{tpu_custom_call.1} parent=51 // pred_region
          %s1768 = smul.u32 %s29, %s28
          %s1770 = ssub.s32 16, 16
          %1771 = vsyncadd %s1762, %s1770
          %s1772 = smul.addr %s1768, 16
          %s1773 = scalar_lea.hbm %s8, %s1772
          %s1775 = sshll.u32 %s1764, 4
          %s1776 = int_to_ptr.vmem [resolvable:$true] %s1775
          %1778 = dma.vmem_to_hbm [thread:$0]  %s1776, 16, %s1773, %s1762
        $region68: #{tpu_custom_call.1} parent=51 // pred_fallthru
          _
      $region52: #{tpu_custom_call.1} parent=5 // pred_fallthru
        _
      %p1779 = scmp.le.s32.totalorder 2, %s19
      // Predicated region
      $region69: #{tpu_custom_call.1} parent=5 // pred_check
        %p1780 = pneg %p1779
      $region70: #{tpu_custom_call.1} parent=5 // pred_check_branch
        %1782 = sbr.rel (%p1780) target = $region72
      $region71: #{tpu_custom_call.1} parent=5 // pred_region
        %s1783 = ssub.s32 %s19, 2
        // Predicated region
        $region73: #{tpu_custom_call.1} parent=71 // pred_check
          %p1784 = pneg %p235
        $region74: #{tpu_custom_call.1} parent=71 // pred_check_branch
          %1786 = sbr.rel (%p1784) target = $region76
        $region75: #{tpu_custom_call.1} parent=71 // pred_region
          %s1787 = sand.u32 %s220, 1
          %s1788 = scalar_lea.sflag [#allocation6], %s1787
          %s1789 = sand.u32 %s220, 1
          %s1790 = scalar_lea.vmem [#allocation5], %s1789
          %1791 = dma.done %s1788, 16
        $region76: #{tpu_custom_call.1} parent=71 // pred_fallthru
          _
      $region72: #{tpu_custom_call.1} parent=5 // pred_fallthru
        _
    $region6: #{tpu_custom_call.1} parent=1 // loop_footer
      %s23 = sadd.s32 1, %s19
    $region7: #{tpu_custom_call.1} parent=1 // loop_footer_branch
      %18 = sbr.rel target = $region3
    $region8: #{tpu_custom_call.1} parent=1 // loop_exit
      _
    %1792 = vsyncpa [#allocation6], 1
    %s1793 = scalar_lea.sflag [#allocation6], 1
    %1794 = vsyncpa %s1793, 1

</llo_original>
